<compile_context>
chip_gen: v7x
topology: tpu7x:2x2x1
jax: 0.10.0
libtpu: 0.0.40
codegen_flags: <defaults>
</compile_context>

<pallas_src>
import jax
import jax.numpy as jnp
from jax.experimental import pallas as pl
from jax.experimental.pallas import tpu as pltpu


def _round_up(x, m):
    return ((x + m - 1) // m) * m


def mlp_kernel(x_ref,
               w1_ref, b1_ref,
               w2_ref, b2_ref,
               w3_ref, b3_ref,
               w4_ref, b4_ref,
               o_ref):
    """Fused 4-layer MLP forward for one batch tile.

    bf16 operands on the MXU, f32 accumulation, f32 bias add, ReLU on the VPU.
    Dropout = identity (eval mode).
    """
    h = x_ref[...]  # bf16 [tb, d_in_pad]

    # Layer 0: Linear(input -> hidden) + ReLU   (input dropout = identity)
    h = jnp.dot(h, w1_ref[...], preferred_element_type=jnp.float32) + b1_ref[...]
    h = jnp.maximum(h, 0.0).astype(jnp.bfloat16)

    # Hidden layer 1: Linear(hidden -> hidden) + ReLU (dropout = identity)
    h = jnp.dot(h, w2_ref[...], preferred_element_type=jnp.float32) + b2_ref[...]
    h = jnp.maximum(h, 0.0).astype(jnp.bfloat16)

    # Hidden layer 2: Linear(hidden -> hidden) + ReLU (dropout = identity)
    h = jnp.dot(h, w3_ref[...], preferred_element_type=jnp.float32) + b3_ref[...]
    h = jnp.maximum(h, 0.0).astype(jnp.bfloat16)

    # Output layer: Linear(hidden -> output_padded), no activation; bf16 store.
    o = jnp.dot(h, w4_ref[...], preferred_element_type=jnp.float32) + b4_ref[...]
    o_ref[...] = o.astype(o_ref.dtype)


def _chip_info():
    """Return (dual_tensorcore, vmem_capacity_bytes) with conservative fallbacks."""
    try:
        vmem_cap = int(pltpu.get_tpu_info().vmem_capacity_bytes)
    except Exception:
        vmem_cap = 64 << 20  # assume smallest (v7x-like) VMEM if unknown
    kind = ""
    try:
        kind = jax.devices()[0].device_kind.lower()
    except Exception:
        pass
    # v7x has 2 TCs per chip; v4/v5p are megacore (2 TCs). v5e/v6e are single-TC.
    dual_tc = any(tag in kind for tag in ("v7", "v5p", "v4"))
    return dual_tc, vmem_cap


def _pick_batch_tile(batch, *, dual_tc, max_batch_tile=512):
    """Rows per grid step.

    batch <= 128 : one step covering the whole (padded) batch (multiple of 16 for
                   bf16 sublane packing).
    single-TC    : largest tile (fewest ~0.35us grid steps, full MXU M on v6e).
    dual-TC      : largest multiple-of-128 tile that still leaves >= 2 'parallel'
                   grid steps so both TensorCores get work.
    """
    if batch <= 128:
        return _round_up(max(batch, 16), 16)
    if dual_tc:
        for cand in (512, 256, 128):
            if cand <= max_batch_tile and batch >= 2 * cand:
                return cand
        return 128
    for cand in (512, 256, 128):
        if cand <= max_batch_tile and batch >= cand:
            return cand
    return 128


def mlp_forward(x, params, *, max_batch_tile=512):
    """params = ((w1,b1),(w2,b2),(w3,b3),(w4,b4)); w: [in,out] f32, b: [1,out] f32."""
    B, d_in = x.shape
    (w1, b1), (w2, b2), (w3, b3), (w4, b4) = params
    hidden = w1.shape[1]
    d_out = w4.shape[1]

    dual_tc, vmem_cap = _chip_info()

    # ---- batch tiling (pad batch to a multiple of the tile) ----
    tb = _pick_batch_tile(B, dual_tc=dual_tc, max_batch_tile=max_batch_tile)
    B_pad = _round_up(B, tb)

    # ---- lane-dense input K dim and output features (multiples of 128) ----
    d_in_pad = _round_up(d_in, 128)
    d_out_pad = _round_up(d_out, 128)

    # ---- cast operands to bf16 (f32 accumulation happens inside the kernel) ----
    x_bf = jnp.pad(x.astype(jnp.bfloat16),
                   ((0, B_pad - B), (0, d_in_pad - d_in)))

    w1b = jnp.pad(w1, ((0, d_in_pad - d_in), (0, 0))).astype(jnp.bfloat16)
    w2b = w2.astype(jnp.bfloat16)
    w3b = w3.astype(jnp.bfloat16)
    w4b = jnp.pad(w4, ((0, 0), (0, d_out_pad - d_out))).astype(jnp.bfloat16)

    b1f = b1.astype(jnp.float32)
    b2f = b2.astype(jnp.float32)
    b3f = b3.astype(jnp.float32)
    b4f = jnp.pad(b4.astype(jnp.float32), ((0, 0), (0, d_out_pad - d_out)))

    grid = (B_pad // tb,)
    full = lambda i: (0, 0)  # weights/biases are grid-invariant

    # ---- cost / VMEM accounting ----
    bf16_b, f32_b = 2, 4
    w_bytes = (w1b.size + w2b.size + w3b.size + w4b.size) * bf16_b
    b_bytes = (b1f.size + b2f.size + b3f.size + b4f.size) * f32_b
    io_bytes = (x_bf.size + B_pad * d_out_pad) * bf16_b
    flops = 2 * B_pad * (d_in_pad * hidden + 2 * hidden * hidden + hidden * d_out_pad)
    cost = pl.CostEstimate(flops=flops, transcendentals=0,
                           bytes_accessed=w_bytes + b_bytes + io_bytes)

    est = (
        w_bytes + b_bytes                              # single-buffered resident weights/biases
        + 2 * tb * d_in_pad * bf16_b                   # double-buffered bf16 input tile
        + 2 * tb * d_out_pad * bf16_b                  # double-buffered bf16 output tile
        + 4 * tb * max(hidden, d_out_pad) * f32_b      # live f32 intermediates
    )
    vmem_budget = max(vmem_cap - (12 << 20), 16 << 20)  # headroom for compiler scratch
    vmem_limit = int(min(max(est + (8 << 20), 16 << 20), vmem_budget))

    def build(single_buffer_weights):
        if single_buffer_weights:
            resident = lambda shape: pl.BlockSpec(shape, full,
                                                  pipeline_mode=pl.Buffered(1))
        else:
            resident = lambda shape: pl.BlockSpec(shape, full)
        return pl.pallas_call(
            mlp_kernel,
            out_shape=jax.ShapeDtypeStruct((B_pad, d_out_pad), jnp.bfloat16),
            grid=grid,
            in_specs=[
                pl.BlockSpec((tb, d_in_pad), lambda i: (i, 0)),
                resident(w1b.shape), resident(b1f.shape),
                resident(w2b.shape), resident(b2f.shape),
                resident(w3b.shape), resident(b3f.shape),
                resident(w4b.shape), resident(b4f.shape),
            ],
            out_specs=pl.BlockSpec((tb, d_out_pad), lambda i: (i, 0)),
            compiler_params=pltpu.CompilerParams(
                dimension_semantics=("parallel",),
                vmem_limit_bytes=vmem_limit,
            ),
            cost_estimate=cost,
        )

    args = (x_bf, w1b, b1f, w2b, b2f, w3b, b3f, w4b, b4f)
    try:
        out = build(True)(*args)
    except Exception:
        # Fallback: default double-buffering if Buffered(1) is rejected by this jax build.
        out = build(False)(*args)

    # Strip batch / output-feature padding.
    return out[:B, :d_out]


def init_linear_params(key, fan_in, fan_out):
    """Deterministic PyTorch-style nn.Linear init: U(-1/sqrt(fan_in), +1/sqrt(fan_in))."""
    kw, kb = jax.random.split(key)
    bound = 1.0 / jnp.sqrt(jnp.float32(fan_in))
    w = jax.random.uniform(kw, (fan_in, fan_out), jnp.float32, -bound, bound)
    b = jax.random.uniform(kb, (1, fan_out), jnp.float32, -bound, bound)
    return w, b


def reference_forward(x, params):
    """Plain-JAX reference with the same bf16-operand / f32-accumulate numerics."""
    (w1, b1), (w2, b2), (w3, b3), (w4, b4) = params

    def layer(h, w, b, relu):
        y = jnp.dot(h.astype(jnp.bfloat16), w.astype(jnp.bfloat16),
                    preferred_element_type=jnp.float32) + b.astype(jnp.float32)
        return jnp.maximum(y, 0.0) if relu else y

    h = layer(x, w1, b1, True)
    h = layer(h, w2, b2, True)
    h = layer(h, w3, b3, True)
    return layer(h, w4, b4, False)


if __name__ == "__main__":
    # Shapes consistent with MLP(input_size, output_size, hidden_layer_num=2):
    # 1 input Linear + 2 hidden Linears + 1 output Linear, dropouts in eval mode.
    batch = 256
    input_size = 64
    hidden_size = 128
    output_size = 16

    root = jax.random.PRNGKey(0)
    kx, k1, k2, k3, k4 = jax.random.split(root, 5)

    x = jax.random.normal(kx, (batch, input_size), jnp.float32)
    params = (
        init_linear_params(k1, input_size, hidden_size),
        init_linear_params(k2, hidden_size, hidden_size),
        init_linear_params(k3, hidden_size, hidden_size),
        init_linear_params(k4, hidden_size, output_size),
    )

    out = mlp_forward(x, params)
    out = jax.block_until_ready(out)

    ref = reference_forward(x, params)
    assert out.shape == (batch, output_size), out.shape
    assert out.dtype == jnp.bfloat16, out.dtype
    assert jnp.allclose(out.astype(jnp.float32), ref, atol=2e-2, rtol=2e-2), \
        "Pallas output mismatch vs reference"

    print("KERNEL_OK")
</pallas_src>

<mosaic_0001>
module attributes {stable_mosaic.version = 11 : i64} {
  func.func @mlp_kernel(%arg0: i32, %arg1: memref<256x128xbf16, #tpu.memory_space<vmem>>, %arg2: memref<128x128xbf16, #tpu.memory_space<vmem>>, %arg3: memref<1x128xf32, #tpu.memory_space<vmem>>, %arg4: memref<128x128xbf16, #tpu.memory_space<vmem>>, %arg5: memref<1x128xf32, #tpu.memory_space<vmem>>, %arg6: memref<128x128xbf16, #tpu.memory_space<vmem>>, %arg7: memref<1x128xf32, #tpu.memory_space<vmem>>, %arg8: memref<128x128xbf16, #tpu.memory_space<vmem>>, %arg9: memref<1x128xf32, #tpu.memory_space<vmem>>, %arg10: memref<256x128xbf16, #tpu.memory_space<vmem>>) attributes {dimension_semantics = [#tpu.dimension_semantics<parallel>], iteration_bounds = array<i64: 1>, scalar_prefetch = 0 : i64, scratch_operands = 0 : i64, tpu.core_type = #tpu.core_type<tc>, window_params = [{transform_indices = @transform_0, window_bounds = array<i64: 256, 128>}, {pipeline_mode = #tpu.pipeline_mode<synchronous>, transform_indices = @transform_1, window_bounds = array<i64: 128, 128>}, {pipeline_mode = #tpu.pipeline_mode<synchronous>, transform_indices = @transform_2, window_bounds = array<i64: 1, 128>}, {pipeline_mode = #tpu.pipeline_mode<synchronous>, transform_indices = @transform_3, window_bounds = array<i64: 128, 128>}, {pipeline_mode = #tpu.pipeline_mode<synchronous>, transform_indices = @transform_4, window_bounds = array<i64: 1, 128>}, {pipeline_mode = #tpu.pipeline_mode<synchronous>, transform_indices = @transform_5, window_bounds = array<i64: 128, 128>}, {pipeline_mode = #tpu.pipeline_mode<synchronous>, transform_indices = @transform_6, window_bounds = array<i64: 1, 128>}, {pipeline_mode = #tpu.pipeline_mode<synchronous>, transform_indices = @transform_7, window_bounds = array<i64: 128, 128>}, {pipeline_mode = #tpu.pipeline_mode<synchronous>, transform_indices = @transform_8, window_bounds = array<i64: 1, 128>}, {transform_indices = @transform_9, window_bounds = array<i64: 256, 128>}]} {
    %c0 = arith.constant 0 : index
    %c0_0 = arith.constant 0 : index
    %0 = vector.load %arg1[%c0, %c0_0] : memref<256x128xbf16, #tpu.memory_space<vmem>>, vector<256x128xbf16>
    %c0_1 = arith.constant 0 : index
    %c0_2 = arith.constant 0 : index
    %1 = vector.load %arg2[%c0_1, %c0_2] : memref<128x128xbf16, #tpu.memory_space<vmem>>, vector<128x128xbf16>
    %cst = arith.constant dense<0.000000e+00> : vector<256x128xf32>
    %2 = tpu.matmul %0, %1, %cst {dimension_numbers = #tpu.dot_dimension_numbers<[1], [0], [0], [1], [0, 0, 1, 1], [], []>} : vector<256x128xbf16>, vector<128x128xbf16>, vector<256x128xf32> -> vector<256x128xf32>
    %c0_3 = arith.constant 0 : index
    %c0_4 = arith.constant 0 : index
    %3 = vector.load %arg3[%c0_3, %c0_4] : memref<1x128xf32, #tpu.memory_space<vmem>>, vector<1x128xf32>
    %4 = vector.broadcast %3 : vector<1x128xf32> to vector<256x128xf32>
    %5 = arith.addf %2, %4 : vector<256x128xf32>
    %cst_5 = arith.constant 0.000000e+00 : f32
    %6 = vector.broadcast %cst_5 : f32 to vector<256x128xf32>
    %7 = arith.maximumf %5, %6 : vector<256x128xf32>
    %8 = arith.truncf %7 : vector<256x128xf32> to vector<256x128xbf16>
    %c0_6 = arith.constant 0 : index
    %c0_7 = arith.constant 0 : index
    %9 = vector.load %arg4[%c0_6, %c0_7] : memref<128x128xbf16, #tpu.memory_space<vmem>>, vector<128x128xbf16>
    %cst_8 = arith.constant dense<0.000000e+00> : vector<256x128xf32>
    %10 = tpu.matmul %8, %9, %cst_8 {dimension_numbers = #tpu.dot_dimension_numbers<[1], [0], [0], [1], [0, 0, 1, 1], [], []>} : vector<256x128xbf16>, vector<128x128xbf16>, vector<256x128xf32> -> vector<256x128xf32>
    %c0_9 = arith.constant 0 : index
    %c0_10 = arith.constant 0 : index
    %11 = vector.load %arg5[%c0_9, %c0_10] : memref<1x128xf32, #tpu.memory_space<vmem>>, vector<1x128xf32>
    %12 = vector.broadcast %11 : vector<1x128xf32> to vector<256x128xf32>
    %13 = arith.addf %10, %12 : vector<256x128xf32>
    %cst_11 = arith.constant 0.000000e+00 : f32
    %14 = vector.broadcast %cst_11 : f32 to vector<256x128xf32>
    %15 = arith.maximumf %13, %14 : vector<256x128xf32>
    %16 = arith.truncf %15 : vector<256x128xf32> to vector<256x128xbf16>
    %c0_12 = arith.constant 0 : index
    %c0_13 = arith.constant 0 : index
    %17 = vector.load %arg6[%c0_12, %c0_13] : memref<128x128xbf16, #tpu.memory_space<vmem>>, vector<128x128xbf16>
    %cst_14 = arith.constant dense<0.000000e+00> : vector<256x128xf32>
    %18 = tpu.matmul %16, %17, %cst_14 {dimension_numbers = #tpu.dot_dimension_numbers<[1], [0], [0], [1], [0, 0, 1, 1], [], []>} : vector<256x128xbf16>, vector<128x128xbf16>, vector<256x128xf32> -> vector<256x128xf32>
    %c0_15 = arith.constant 0 : index
    %c0_16 = arith.constant 0 : index
    %19 = vector.load %arg7[%c0_15, %c0_16] : memref<1x128xf32, #tpu.memory_space<vmem>>, vector<1x128xf32>
    %20 = vector.broadcast %19 : vector<1x128xf32> to vector<256x128xf32>
    %21 = arith.addf %18, %20 : vector<256x128xf32>
    %cst_17 = arith.constant 0.000000e+00 : f32
    %22 = vector.broadcast %cst_17 : f32 to vector<256x128xf32>
    %23 = arith.maximumf %21, %22 : vector<256x128xf32>
    %24 = arith.truncf %23 : vector<256x128xf32> to vector<256x128xbf16>
    %c0_18 = arith.constant 0 : index
    %c0_19 = arith.constant 0 : index
    %25 = vector.load %arg8[%c0_18, %c0_19] : memref<128x128xbf16, #tpu.memory_space<vmem>>, vector<128x128xbf16>
    %cst_20 = arith.constant dense<0.000000e+00> : vector<256x128xf32>
    %26 = tpu.matmul %24, %25, %cst_20 {dimension_numbers = #tpu.dot_dimension_numbers<[1], [0], [0], [1], [0, 0, 1, 1], [], []>} : vector<256x128xbf16>, vector<128x128xbf16>, vector<256x128xf32> -> vector<256x128xf32>
    %c0_21 = arith.constant 0 : index
    %c0_22 = arith.constant 0 : index
    %27 = vector.load %arg9[%c0_21, %c0_22] : memref<1x128xf32, #tpu.memory_space<vmem>>, vector<1x128xf32>
    %28 = vector.broadcast %27 : vector<1x128xf32> to vector<256x128xf32>
    %29 = arith.addf %26, %28 : vector<256x128xf32>
    %30 = arith.truncf %29 : vector<256x128xf32> to vector<256x128xbf16>
    %c0_23 = arith.constant 0 : index
    %c0_24 = arith.constant 0 : index
    %31 = vector.load %arg10[%c0_23, %c0_24] : memref<256x128xbf16, #tpu.memory_space<vmem>>, vector<256x128xbf16>
    tpu.vector_store %arg10[%c0_23, %c0_24], %30 {strides = array<i32>} : memref<256x128xbf16, #tpu.memory_space<vmem>>, vector<256x128xbf16>,
    return
  }
  func.func @transform_0(%arg0: i32) -> (i32, i32) {
    %c0_i32 = arith.constant 0 : i32
    %c0_i32_0 = arith.constant 0 : i32
    return %arg0, %c0_i32 : i32, i32
  }
  func.func @transform_1(%arg0: i32) -> (i32, i32) {
    %c0_i32 = arith.constant 0 : i32
    %c0_i32_0 = arith.constant 0 : i32
    %c0_i32_1 = arith.constant 0 : i32
    return %c0_i32, %c0_i32_0 : i32, i32
  }
  func.func @transform_2(%arg0: i32) -> (i32, i32) {
    %c0_i32 = arith.constant 0 : i32
    %c0_i32_0 = arith.constant 0 : i32
    %c0_i32_1 = arith.constant 0 : i32
    return %c0_i32, %c0_i32_0 : i32, i32
  }
  func.func @transform_3(%arg0: i32) -> (i32, i32) {
    %c0_i32 = arith.constant 0 : i32
    %c0_i32_0 = arith.constant 0 : i32
    %c0_i32_1 = arith.constant 0 : i32
    return %c0_i32, %c0_i32_0 : i32, i32
  }
  func.func @transform_4(%arg0: i32) -> (i32, i32) {
    %c0_i32 = arith.constant 0 : i32
    %c0_i32_0 = arith.constant 0 : i32
    %c0_i32_1 = arith.constant 0 : i32
    return %c0_i32, %c0_i32_0 : i32, i32
  }
  func.func @transform_5(%arg0: i32) -> (i32, i32) {
    %c0_i32 = arith.constant 0 : i32
    %c0_i32_0 = arith.constant 0 : i32
    %c0_i32_1 = arith.constant 0 : i32
    return %c0_i32, %c0_i32_0 : i32, i32
  }
  func.func @transform_6(%arg0: i32) -> (i32, i32) {
    %c0_i32 = arith.constant 0 : i32
    %c0_i32_0 = arith.constant 0 : i32
    %c0_i32_1 = arith.constant 0 : i32
    return %c0_i32, %c0_i32_0 : i32, i32
  }
  func.func @transform_7(%arg0: i32) -> (i32, i32) {
    %c0_i32 = arith.constant 0 : i32
    %c0_i32_0 = arith.constant 0 : i32
    %c0_i32_1 = arith.constant 0 : i32
    return %c0_i32, %c0_i32_0 : i32, i32
  }
  func.func @transform_8(%arg0: i32) -> (i32, i32) {
    %c0_i32 = arith.constant 0 : i32
    %c0_i32_0 = arith.constant 0 : i32
    %c0_i32_1 = arith.constant 0 : i32
    return %c0_i32, %c0_i32_0 : i32, i32
  }
  func.func @transform_9(%arg0: i32) -> (i32, i32) {
    %c0_i32 = arith.constant 0 : i32
    %c0_i32_0 = arith.constant 0 : i32
    return %arg0, %c0_i32 : i32, i32
  }
}

module attributes {stable_mosaic.version = 11 : i64} {
  func.func @mlp_kernel(%arg0: i32, %arg1: memref<256x128xbf16, #tpu.memory_space<vmem>>, %arg2: memref<128x128xbf16, #tpu.memory_space<vmem>>, %arg3: memref<1x128xf32, #tpu.memory_space<vmem>>, %arg4: memref<128x128xbf16, #tpu.memory_space<vmem>>, %arg5: memref<1x128xf32, #tpu.memory_space<vmem>>, %arg6: memref<128x128xbf16, #tpu.memory_space<vmem>>, %arg7: memref<1x128xf32, #tpu.memory_space<vmem>>, %arg8: memref<128x128xbf16, #tpu.memory_space<vmem>>, %arg9: memref<1x128xf32, #tpu.memory_space<vmem>>, %arg10: memref<256x128xbf16, #tpu.memory_space<vmem>>) attributes {dimension_semantics = [#tpu.dimension_semantics<parallel>], iteration_bounds = array<i64: 1>, scalar_prefetch = 0 : i64, scratch_operands = 0 : i64, tpu.core_type = #tpu.core_type<tc>, window_params = [{transform_indices = @transform_0, window_bounds = array<i64: 256, 128>}, {pipeline_mode = #tpu.pipeline_mode<synchronous>, transform_indices = @transform_1, window_bounds = array<i64: 128, 128>}, {pipeline_mode = #tpu.pipeline_mode<synchronous>, transform_indices = @transform_2, window_bounds = array<i64: 1, 128>}, {pipeline_mode = #tpu.pipeline_mode<synchronous>, transform_indices = @transform_3, window_bounds = array<i64: 128, 128>}, {pipeline_mode = #tpu.pipeline_mode<synchronous>, transform_indices = @transform_4, window_bounds = array<i64: 1, 128>}, {pipeline_mode = #tpu.pipeline_mode<synchronous>, transform_indices = @transform_5, window_bounds = array<i64: 128, 128>}, {pipeline_mode = #tpu.pipeline_mode<synchronous>, transform_indices = @transform_6, window_bounds = array<i64: 1, 128>}, {pipeline_mode = #tpu.pipeline_mode<synchronous>, transform_indices = @transform_7, window_bounds = array<i64: 128, 128>}, {pipeline_mode = #tpu.pipeline_mode<synchronous>, transform_indices = @transform_8, window_bounds = array<i64: 1, 128>}, {transform_indices = @transform_9, window_bounds = array<i64: 256, 128>}]} {
    %c0 = arith.constant 0 : index
    %c0_0 = arith.constant 0 : index
    %0 = vector.load %arg1[%c0, %c0_0] : memref<256x128xbf16, #tpu.memory_space<vmem>>, vector<256x128xbf16>
    %c0_1 = arith.constant 0 : index
    %c0_2 = arith.constant 0 : index
    %1 = vector.load %arg2[%c0_1, %c0_2] : memref<128x128xbf16, #tpu.memory_space<vmem>>, vector<128x128xbf16>
    %cst = arith.constant dense<0.000000e+00> : vector<256x128xf32>
    %2 = tpu.matmul %0, %1, %cst {dimension_numbers = #tpu.dot_dimension_numbers<[1], [0], [0], [1], [0, 0, 1, 1], [], []>} : vector<256x128xbf16>, vector<128x128xbf16>, vector<256x128xf32> -> vector<256x128xf32>
    %c0_3 = arith.constant 0 : index
    %c0_4 = arith.constant 0 : index
    %3 = vector.load %arg3[%c0_3, %c0_4] : memref<1x128xf32, #tpu.memory_space<vmem>>, vector<1x128xf32>
    %4 = vector.broadcast %3 : vector<1x128xf32> to vector<256x128xf32>
    %5 = arith.addf %2, %4 : vector<256x128xf32>
    %cst_5 = arith.constant 0.000000e+00 : f32
    %6 = vector.broadcast %cst_5 : f32 to vector<256x128xf32>
    %7 = arith.maximumf %5, %6 : vector<256x128xf32>
    %8 = arith.truncf %7 : vector<256x128xf32> to vector<256x128xbf16>
    %c0_6 = arith.constant 0 : index
    %c0_7 = arith.constant 0 : index
    %9 = vector.load %arg4[%c0_6, %c0_7] : memref<128x128xbf16, #tpu.memory_space<vmem>>, vector<128x128xbf16>
    %cst_8 = arith.constant dense<0.000000e+00> : vector<256x128xf32>
    %10 = tpu.matmul %8, %9, %cst_8 {dimension_numbers = #tpu.dot_dimension_numbers<[1], [0], [0], [1], [0, 0, 1, 1], [], []>} : vector<256x128xbf16>, vector<128x128xbf16>, vector<256x128xf32> -> vector<256x128xf32>
    %c0_9 = arith.constant 0 : index
    %c0_10 = arith.constant 0 : index
    %11 = vector.load %arg5[%c0_9, %c0_10] : memref<1x128xf32, #tpu.memory_space<vmem>>, vector<1x128xf32>
    %12 = vector.broadcast %11 : vector<1x128xf32> to vector<256x128xf32>
    %13 = arith.addf %10, %12 : vector<256x128xf32>
    %cst_11 = arith.constant 0.000000e+00 : f32
    %14 = vector.broadcast %cst_11 : f32 to vector<256x128xf32>
    %15 = arith.maximumf %13, %14 : vector<256x128xf32>
    %16 = arith.truncf %15 : vector<256x128xf32> to vector<256x128xbf16>
    %c0_12 = arith.constant 0 : index
    %c0_13 = arith.constant 0 : index
    %17 = vector.load %arg6[%c0_12, %c0_13] : memref<128x128xbf16, #tpu.memory_space<vmem>>, vector<128x128xbf16>
    %cst_14 = arith.constant dense<0.000000e+00> : vector<256x128xf32>
    %18 = tpu.matmul %16, %17, %cst_14 {dimension_numbers = #tpu.dot_dimension_numbers<[1], [0], [0], [1], [0, 0, 1, 1], [], []>} : vector<256x128xbf16>, vector<128x128xbf16>, vector<256x128xf32> -> vector<256x128xf32>
    %c0_15 = arith.constant 0 : index
    %c0_16 = arith.constant 0 : index
    %19 = vector.load %arg7[%c0_15, %c0_16] : memref<1x128xf32, #tpu.memory_space<vmem>>, vector<1x128xf32>
    %20 = vector.broadcast %19 : vector<1x128xf32> to vector<256x128xf32>
    %21 = arith.addf %18, %20 : vector<256x128xf32>
    %cst_17 = arith.constant 0.000000e+00 : f32
    %22 = vector.broadcast %cst_17 : f32 to vector<256x128xf32>
    %23 = arith.maximumf %21, %22 : vector<256x128xf32>
    %24 = arith.truncf %23 : vector<256x128xf32> to vector<256x128xbf16>
    %c0_18 = arith.constant 0 : index
    %c0_19 = arith.constant 0 : index
    %25 = vector.load %arg8[%c0_18, %c0_19] : memref<128x128xbf16, #tpu.memory_space<vmem>>, vector<128x128xbf16>
    %cst_20 = arith.constant dense<0.000000e+00> : vector<256x128xf32>
    %26 = tpu.matmul %24, %25, %cst_20 {dimension_numbers = #tpu.dot_dimension_numbers<[1], [0], [0], [1], [0, 0, 1, 1], [], []>} : vector<256x128xbf16>, vector<128x128xbf16>, vector<256x128xf32> -> vector<256x128xf32>
    %c0_21 = arith.constant 0 : index
    %c0_22 = arith.constant 0 : index
    %27 = vector.load %arg9[%c0_21, %c0_22] : memref<1x128xf32, #tpu.memory_space<vmem>>, vector<1x128xf32>
    %28 = vector.broadcast %27 : vector<1x128xf32> to vector<256x128xf32>
    %29 = arith.addf %26, %28 : vector<256x128xf32>
    %30 = arith.truncf %29 : vector<256x128xf32> to vector<256x128xbf16>
    %c0_23 = arith.constant 0 : index
    %c0_24 = arith.constant 0 : index
    %31 = vector.load %arg10[%c0_23, %c0_24] : memref<256x128xbf16, #tpu.memory_space<vmem>>, vector<256x128xbf16>
    tpu.vector_store %arg10[%c0_23, %c0_24], %30 {strides = array<i32>} : memref<256x128xbf16, #tpu.memory_space<vmem>>, vector<256x128xbf16>,
    return
  }
  func.func @transform_0(%arg0: i32) -> (i32, i32) {
    %c0_i32 = arith.constant 0 : i32
    %c0_i32_0 = arith.constant 0 : i32
    return %arg0, %c0_i32 : i32, i32
  }
  func.func @transform_1(%arg0: i32) -> (i32, i32) {
    %c0_i32 = arith.constant 0 : i32
    %c0_i32_0 = arith.constant 0 : i32
    %c0_i32_1 = arith.constant 0 : i32
    return %c0_i32, %c0_i32_0 : i32, i32
  }
  func.func @transform_2(%arg0: i32) -> (i32, i32) {
    %c0_i32 = arith.constant 0 : i32
    %c0_i32_0 = arith.constant 0 : i32
    %c0_i32_1 = arith.constant 0 : i32
    return %c0_i32, %c0_i32_0 : i32, i32
  }
  func.func @transform_3(%arg0: i32) -> (i32, i32) {
    %c0_i32 = arith.constant 0 : i32
    %c0_i32_0 = arith.constant 0 : i32
    %c0_i32_1 = arith.constant 0 : i32
    return %c0_i32, %c0_i32_0 : i32, i32
  }
  func.func @transform_4(%arg0: i32) -> (i32, i32) {
    %c0_i32 = arith.constant 0 : i32
    %c0_i32_0 = arith.constant 0 : i32
    %c0_i32_1 = arith.constant 0 : i32
    return %c0_i32, %c0_i32_0 : i32, i32
  }
  func.func @transform_5(%arg0: i32) -> (i32, i32) {
    %c0_i32 = arith.constant 0 : i32
    %c0_i32_0 = arith.constant 0 : i32
    %c0_i32_1 = arith.constant 0 : i32
    return %c0_i32, %c0_i32_0 : i32, i32
  }
  func.func @transform_6(%arg0: i32) -> (i32, i32) {
    %c0_i32 = arith.constant 0 : i32
    %c0_i32_0 = arith.constant 0 : i32
    %c0_i32_1 = arith.constant 0 : i32
    return %c0_i32, %c0_i32_0 : i32, i32
  }
  func.func @transform_7(%arg0: i32) -> (i32, i32) {
    %c0_i32 = arith.constant 0 : i32
    %c0_i32_0 = arith.constant 0 : i32
    %c0_i32_1 = arith.constant 0 : i32
    return %c0_i32, %c0_i32_0 : i32, i32
  }
  func.func @transform_8(%arg0: i32) -> (i32, i32) {
    %c0_i32 = arith.constant 0 : i32
    %c0_i32_0 = arith.constant 0 : i32
    %c0_i32_1 = arith.constant 0 : i32
    return %c0_i32, %c0_i32_0 : i32, i32
  }
  func.func @transform_9(%arg0: i32) -> (i32, i32) {
    %c0_i32 = arith.constant 0 : i32
    %c0_i32_0 = arith.constant 0 : i32
    return %arg0, %c0_i32 : i32, i32
  }
}

</mosaic_0001>

<llo_original>
// kernel: tpu_custom_call.1
$region0: #{tpu_custom_call.1}
  #allocation0 [shape = 'u32[]', space=smem, size = 0x4, offset = 0x4, fixed_abs, tag = 'smem constant byte address 0x4 - core index']
  #allocation1 [shape = 'u32[144,128]{1,0:T(1,128)}', space=vmem, size = 0x12000, scoped, tag = 'internal scratch']
  %s0 = inlined_call_operand.hbm [shape: bf16[256,128], index: 0, kind: input, shape index: {}]
  %s1 = inlined_call_operand.hbm [shape: bf16[128,128], index: 1, kind: input, shape index: {}]
  %s2 = inlined_call_operand.vmem [shape: f32[1,128], index: 2, kind: input, shape index: {}]
  %s3 = inlined_call_operand.hbm [shape: bf16[128,128], index: 3, kind: input, shape index: {}]
  %s4 = inlined_call_operand.vmem [shape: f32[1,128], index: 4, kind: input, shape index: {}]
  %s5 = inlined_call_operand.hbm [shape: bf16[128,128], index: 5, kind: input, shape index: {}]
  %s6 = inlined_call_operand.vmem [shape: f32[1,128], index: 6, kind: input, shape index: {}]
  %s7 = inlined_call_operand.hbm [shape: bf16[128,128], index: 7, kind: input, shape index: {}]
  %s8 = inlined_call_operand.vmem [shape: f32[1,128], index: 8, kind: input, shape index: {}]
  %s9 = inlined_call_operand.hbm [shape: bf16[256,128], index: 9, kind: output, shape index: {}]
  %s10 = sld [smem:[#allocation0]]
  $region66: #{tpu_custom_call.1} parent=0
    _
  %s12 = ssub.s32 1, %s10
  %s13 = scalar_select 0, %s12, %s10
  $region1: #{tpu_custom_call.1} parent=0
    #allocation2 [shape = 'u8[65536]{0}', space=vmem, size = 0x10000, scoped, tag = 'input window, operand 0, single buffered']
    #allocation3 [shape = 's32[1]{0}', space=sflag, size = 0x4, scoped, tag = 'scoped memory for tpu_custom_call.1']
    #allocation4 [shape = 's32[1]{0}', space=sflag, size = 0x4, scoped, tag = 'scoped memory for tpu_custom_call.1']
    #allocation5 [shape = 'u8[32768]{0}', space=vmem, size = 0x8000, scoped, tag = 'input window, operand 1, single buffered']
    #allocation6 [shape = 's32[1]{0}', space=sflag, size = 0x4, scoped, tag = 'scoped memory for tpu_custom_call.1']
    #allocation7 [shape = 'u8[32768]{0}', space=vmem, size = 0x8000, scoped, tag = 'input window, operand 3, single buffered']
    #allocation8 [shape = 'u8[32768]{0}', space=vmem, size = 0x8000, scoped, tag = 'input window, operand 5, single buffered']
    #allocation9 [shape = 's32[1]{0}', space=sflag, size = 0x4, scoped, tag = 'scoped memory for tpu_custom_call.1']
    #allocation10 [shape = 'u8[32768]{0}', space=vmem, size = 0x8000, scoped, tag = 'input window, operand 7, single buffered']
    #allocation11 [shape = 'u8[65536]{0}', space=vmem, size = 0x10000, scoped, tag = 'output window, operand 0, single buffered']
    %14 = vsyncpa [#allocation3], 0
    %15 = vsyncpa [#allocation6], 0
    %16 = vsyncpa [#allocation9], 0
    %17 = vsyncpa [#allocation4], 0
    // Predicated region
    $region2: #{tpu_custom_call.1} parent=1 // pred_check
      _
    $region3: #{tpu_custom_call.1} parent=1 // pred_check_branch
      %19 = sbr.rel (0) target = $region5
    $region4: #{tpu_custom_call.1} parent=1 // pred_region
      %s21 = ssub.s32 2048, 2048
      %22 = vsyncadd [#allocation3], %s21
      %s23 = sshll.u32 [#allocation2], 4
      %s24 = int_to_ptr.vmem [resolvable:$true] %s23
      %29 = dma.hbm_to_vmem [thread:$0]  %s0, 2048, %s24, [#allocation3], 64, 64, 4
    $region5: #{tpu_custom_call.1} parent=1 // pred_fallthru
      _
    // Predicated region
    $region6: #{tpu_custom_call.1} parent=1 // pred_check
      _
    $region7: #{tpu_custom_call.1} parent=1 // pred_check_branch
      %31 = sbr.rel (0) target = $region9
    $region8: #{tpu_custom_call.1} parent=1 // pred_region
      %s33 = ssub.s32 1024, 1024
      %34 = vsyncadd [#allocation6], %s33
      %s35 = sshll.u32 [#allocation5], 4
      %s36 = int_to_ptr.vmem [resolvable:$true] %s35
      %41 = dma.hbm_to_vmem [thread:$0]  %s1, 1024, %s36, [#allocation6], 64, 64, 4
    $region9: #{tpu_custom_call.1} parent=1 // pred_fallthru
      _
    // Predicated region
    $region10: #{tpu_custom_call.1} parent=1 // pred_check
      _
    $region11: #{tpu_custom_call.1} parent=1 // pred_check_branch
      %43 = sbr.rel (0) target = $region13
    $region12: #{tpu_custom_call.1} parent=1 // pred_region
      _
    $region13: #{tpu_custom_call.1} parent=1 // pred_fallthru
      _
    // Predicated region
    $region14: #{tpu_custom_call.1} parent=1 // pred_check
      _
    $region15: #{tpu_custom_call.1} parent=1 // pred_check_branch
      %45 = sbr.rel (0) target = $region17
    $region16: #{tpu_custom_call.1} parent=1 // pred_region
      %s47 = ssub.s32 1024, 1024
      %48 = vsyncadd [#allocation6], %s47
      %s49 = sshll.u32 [#allocation7], 4
      %s50 = int_to_ptr.vmem [resolvable:$true] %s49
      %55 = dma.hbm_to_vmem [thread:$0]  %s3, 1024, %s50, [#allocation6], 64, 64, 4
    $region17: #{tpu_custom_call.1} parent=1 // pred_fallthru
      _
    // Predicated region
    $region18: #{tpu_custom_call.1} parent=1 // pred_check
      _
    $region19: #{tpu_custom_call.1} parent=1 // pred_check_branch
      %57 = sbr.rel (0) target = $region21
    $region20: #{tpu_custom_call.1} parent=1 // pred_region
      _
    $region21: #{tpu_custom_call.1} parent=1 // pred_fallthru
      _
    // Predicated region
    $region22: #{tpu_custom_call.1} parent=1 // pred_check
      _
    $region23: #{tpu_custom_call.1} parent=1 // pred_check_branch
      %59 = sbr.rel (0) target = $region25
    $region24: #{tpu_custom_call.1} parent=1 // pred_region
      %s61 = ssub.s32 1024, 1024
      %62 = vsyncadd [#allocation9], %s61
      %s63 = sshll.u32 [#allocation8], 4
      %s64 = int_to_ptr.vmem [resolvable:$true] %s63
      %69 = dma.hbm_to_vmem [thread:$0]  %s5, 1024, %s64, [#allocation9], 64, 64, 4
    $region25: #{tpu_custom_call.1} parent=1 // pred_fallthru
      _
    // Predicated region
    $region26: #{tpu_custom_call.1} parent=1 // pred_check
      _
    $region27: #{tpu_custom_call.1} parent=1 // pred_check_branch
      %71 = sbr.rel (0) target = $region29
    $region28: #{tpu_custom_call.1} parent=1 // pred_region
      _
    $region29: #{tpu_custom_call.1} parent=1 // pred_fallthru
      _
    // Predicated region
    $region30: #{tpu_custom_call.1} parent=1 // pred_check
      _
    $region31: #{tpu_custom_call.1} parent=1 // pred_check_branch
      %73 = sbr.rel (0) target = $region33
    $region32: #{tpu_custom_call.1} parent=1 // pred_region
      %s75 = ssub.s32 1024, 1024
      %76 = vsyncadd [#allocation9], %s75
      %s77 = sshll.u32 [#allocation10], 4
      %s78 = int_to_ptr.vmem [resolvable:$true] %s77
      %83 = dma.hbm_to_vmem [thread:$0]  %s7, 1024, %s78, [#allocation9], 64, 64, 4
    $region33: #{tpu_custom_call.1} parent=1 // pred_fallthru
      _
    // Predicated region
    $region34: #{tpu_custom_call.1} parent=1 // pred_check
      _
    $region35: #{tpu_custom_call.1} parent=1 // pred_check_branch
      %85 = sbr.rel (0) target = $region37
    $region36: #{tpu_custom_call.1} parent=1 // pred_region
      _
    $region37: #{tpu_custom_call.1} parent=1 // pred_fallthru
      _
    // Predicated region
    $region38: #{tpu_custom_call.1} parent=1 // pred_check
      _
    $region39: #{tpu_custom_call.1} parent=1 // pred_check_branch
      %87 = sbr.rel (0) target = $region41
    $region40: #{tpu_custom_call.1} parent=1 // pred_region
      %88 = dma.done [#allocation3], 2048
    $region41: #{tpu_custom_call.1} parent=1 // pred_fallthru
      _
    // Predicated region
    $region42: #{tpu_custom_call.1} parent=1 // pred_check
      _
    $region43: #{tpu_custom_call.1} parent=1 // pred_check_branch
      %90 = sbr.rel (0) target = $region45
    $region44: #{tpu_custom_call.1} parent=1 // pred_region
      %91 = dma.done [#allocation6], 1024
    $region45: #{tpu_custom_call.1} parent=1 // pred_fallthru
      _
    // Predicated region
    $region46: #{tpu_custom_call.1} parent=1 // pred_check
      _
    $region47: #{tpu_custom_call.1} parent=1 // pred_check_branch
      %93 = sbr.rel (0) target = $region49
    $region48: #{tpu_custom_call.1} parent=1 // pred_region
      %94 = dma.done [#allocation6], 1024
    $region49: #{tpu_custom_call.1} parent=1 // pred_fallthru
      _
    // Predicated region
    $region50: #{tpu_custom_call.1} parent=1 // pred_check
      _
    $region51: #{tpu_custom_call.1} parent=1 // pred_check_branch
      %96 = sbr.rel (0) target = $region53
    $region52: #{tpu_custom_call.1} parent=1 // pred_region
      %97 = dma.done [#allocation9], 1024
    $region53: #{tpu_custom_call.1} parent=1 // pred_fallthru
      _
    // Predicated region
    $region54: #{tpu_custom_call.1} parent=1 // pred_check
      _
    $region55: #{tpu_custom_call.1} parent=1 // pred_check_branch
      %99 = sbr.rel (0) target = $region57
    $region56: #{tpu_custom_call.1} parent=1 // pred_region
      %100 = dma.done [#allocation9], 1024
    $region57: #{tpu_custom_call.1} parent=1 // pred_fallthru
      _
    %v102 = vld [vmem:[#allocation2] sm:$0xf]
    %v103 = vld [vmem:[#allocation2 + $0x4] sm:$0xf]
    %v104 = vld [vmem:[#allocation2 + $0x8] sm:$0xf]
    %v105 = vld [vmem:[#allocation2 + $0xc] sm:$0xf]
    %v106 = vld [vmem:[#allocation2 + $0x10] sm:$0xf]
    %v107 = vld [vmem:[#allocation2 + $0x14] sm:$0xf]
    %v108 = vld [vmem:[#allocation2 + $0x18] sm:$0xf]
    %v109 = vld [vmem:[#allocation2 + $0x1c] sm:$0xf]
    %v110 = vld [vmem:[#allocation2 + $0x20] sm:$0xf]
    %v111 = vld [vmem:[#allocation2 + $0x24] sm:$0xf]
    %v112 = vld [vmem:[#allocation2 + $0x28] sm:$0xf]
    %v113 = vld [vmem:[#allocation2 + $0x2c] sm:$0xf]
    %v114 = vld [vmem:[#allocation2 + $0x30] sm:$0xf]
    %v115 = vld [vmem:[#allocation2 + $0x34] sm:$0xf]
    %v116 = vld [vmem:[#allocation2 + $0x38] sm:$0xf]
    %v117 = vld [vmem:[#allocation2 + $0x3c] sm:$0xf]
    %v118 = vld [vmem:[#allocation2 + $0x40] sm:$0xf]
    %v119 = vld [vmem:[#allocation2 + $0x44] sm:$0xf]
    %v120 = vld [vmem:[#allocation2 + $0x48] sm:$0xf]
    %v121 = vld [vmem:[#allocation2 + $0x4c] sm:$0xf]
    %v122 = vld [vmem:[#allocation2 + $0x50] sm:$0xf]
    %v123 = vld [vmem:[#allocation2 + $0x54] sm:$0xf]
    %v124 = vld [vmem:[#allocation2 + $0x58] sm:$0xf]
    %v125 = vld [vmem:[#allocation2 + $0x5c] sm:$0xf]
    %v126 = vld [vmem:[#allocation2 + $0x60] sm:$0xf]
    %v127 = vld [vmem:[#allocation2 + $0x64] sm:$0xf]
    %v128 = vld [vmem:[#allocation2 + $0x68] sm:$0xf]
    %v129 = vld [vmem:[#allocation2 + $0x6c] sm:$0xf]
    %v130 = vld [vmem:[#allocation2 + $0x70] sm:$0xf]
    %v131 = vld [vmem:[#allocation2 + $0x74] sm:$0xf]
    %v132 = vld [vmem:[#allocation2 + $0x78] sm:$0xf]
    %v133 = vld [vmem:[#allocation2 + $0x7c] sm:$0xf]
    %v134 = vld [vmem:[#allocation5] sm:$0xf]
    %v135 = vld [vmem:[#allocation5 + $0x4] sm:$0xf]
    %v136 = vld [vmem:[#allocation5 + $0x8] sm:$0xf]
    %v137 = vld [vmem:[#allocation5 + $0xc] sm:$0xf]
    %v138 = vld [vmem:[#allocation5 + $0x10] sm:$0xf]
    %v139 = vld [vmem:[#allocation5 + $0x14] sm:$0xf]
    %v140 = vld [vmem:[#allocation5 + $0x18] sm:$0xf]
    %v141 = vld [vmem:[#allocation5 + $0x1c] sm:$0xf]
    %v142 = vld [vmem:[#allocation5 + $0x20] sm:$0xf]
    %v143 = vld [vmem:[#allocation5 + $0x24] sm:$0xf]
    %v144 = vld [vmem:[#allocation5 + $0x28] sm:$0xf]
    %v145 = vld [vmem:[#allocation5 + $0x2c] sm:$0xf]
    %v146 = vld [vmem:[#allocation5 + $0x30] sm:$0xf]
    %v147 = vld [vmem:[#allocation5 + $0x34] sm:$0xf]
    %v148 = vld [vmem:[#allocation5 + $0x38] sm:$0xf]
    %v149 = vld [vmem:[#allocation5 + $0x3c] sm:$0xf]
    %v150 = vld [vmem:[%s2] sm:$0x1]
    %v152 = vlaneseq
    %v153 = vshrl.u32 %v152, 7
    %v154 = vsub.s32 0, %v153
    %v155 = vrot.slane %v150, %v154
    %v189 = vunpack.c.l.b16 %v102
    %v190 = vunpack.c.l.b16 %v103
    %v191 = vunpack.c.l.b16 %v104
    %v192 = vunpack.c.l.b16 %v105
    %v193 = vunpack.c.l.b16 %v106
    %v194 = vunpack.c.l.b16 %v107
    %v195 = vunpack.c.l.b16 %v108
    %v196 = vunpack.c.l.b16 %v109
    %v197 = vunpack.c.l.b16 %v110
    %v198 = vunpack.c.l.b16 %v111
    %v199 = vunpack.c.l.b16 %v112
    %v200 = vunpack.c.l.b16 %v113
    %v201 = vunpack.c.l.b16 %v114
    %v202 = vunpack.c.l.b16 %v115
    %v203 = vunpack.c.l.b16 %v116
    %v204 = vunpack.c.l.b16 %v117
    %v205 = vunpack.c.l.b16 %v118
    %v206 = vunpack.c.l.b16 %v119
    %v207 = vunpack.c.l.b16 %v120
    %v208 = vunpack.c.l.b16 %v121
    %v209 = vunpack.c.l.b16 %v122
    %v210 = vunpack.c.l.b16 %v123
    %v211 = vunpack.c.l.b16 %v124
    %v212 = vunpack.c.l.b16 %v125
    %v213 = vunpack.c.l.b16 %v126
    %v214 = vunpack.c.l.b16 %v127
    %v215 = vunpack.c.l.b16 %v128
    %v216 = vunpack.c.l.b16 %v129
    %v217 = vunpack.c.l.b16 %v130
    %v218 = vunpack.c.l.b16 %v131
    %v219 = vunpack.c.l.b16 %v132
    %v220 = vunpack.c.l.b16 %v133
    %v221 = vpack.c.b16 %v190, %v189
    %v222 = vpack.c.b16 %v192, %v191
    %v223 = vpack.c.b16 %v194, %v193
    %v224 = vpack.c.b16 %v196, %v195
    %v225 = vpack.c.b16 %v198, %v197
    %v226 = vpack.c.b16 %v200, %v199
    %v227 = vpack.c.b16 %v202, %v201
    %v228 = vpack.c.b16 %v204, %v203
    %v229 = vpack.c.b16 %v206, %v205
    %v230 = vpack.c.b16 %v208, %v207
    %v231 = vpack.c.b16 %v210, %v209
    %v232 = vpack.c.b16 %v212, %v211
    %v233 = vpack.c.b16 %v214, %v213
    %v234 = vpack.c.b16 %v216, %v215
    %v235 = vpack.c.b16 %v218, %v217
    %v236 = vpack.c.b16 %v220, %v219
    %v269 = vunpack.c.l.b16 %v134
    %v270 = vunpack.c.l.b16 %v135
    %v271 = vunpack.c.l.b16 %v136
    %v272 = vunpack.c.l.b16 %v137
    %v273 = vunpack.c.l.b16 %v138
    %v274 = vunpack.c.l.b16 %v139
    %v275 = vunpack.c.l.b16 %v140
    %v276 = vunpack.c.l.b16 %v141
    %v277 = vunpack.c.l.b16 %v142
    %v278 = vunpack.c.l.b16 %v143
    %v279 = vunpack.c.l.b16 %v144
    %v280 = vunpack.c.l.b16 %v145
    %v281 = vunpack.c.l.b16 %v146
    %v282 = vunpack.c.l.b16 %v147
    %v283 = vunpack.c.l.b16 %v148
    %v284 = vunpack.c.l.b16 %v149
    %v285 = vpack.c.b16 %v270, %v269
    %v286 = vpack.c.b16 %v272, %v271
    %v287 = vpack.c.b16 %v274, %v273
    %v288 = vpack.c.b16 %v276, %v275
    %v289 = vpack.c.b16 %v278, %v277
    %v290 = vpack.c.b16 %v280, %v279
    %v291 = vpack.c.b16 %v282, %v281
    %v292 = vpack.c.b16 %v284, %v283
    %301 = vmatprep.subr.bf16.mxu0 0
    %302 = vmatpush1.bf16.msra.mxu0 %v285
    %303 = vmatprep.subr.bf16.mxu0 0
    %304 = vmatpush1.bf16.msra.mxu0 %v286
    %305 = vmatprep.subr.bf16.mxu0 0
    %306 = vmatpush1.bf16.msra.mxu0 %v287
    %307 = vmatprep.subr.bf16.mxu0 0
    %308 = vmatpush1.bf16.msra.mxu0 %v288
    %309 = vmatprep.subr.bf16.mxu0 0
    %310 = vmatpush1.bf16.msra.mxu0 %v289
    %311 = vmatprep.subr.bf16.mxu0 0
    %312 = vmatpush1.bf16.msra.mxu0 %v290
    %313 = vmatprep.subr.bf16.mxu0 0
    %314 = vmatpush1.bf16.msra.mxu0 %v291
    %315 = vmatprep.subr.bf16.mxu0 0
    %316 = vmatpush1.bf16.msra.mxu0 %v292
    %317 = vmatprep.subr.bf16.mxu0 0
    %318 = vmatpush1.bf16.msra.mxu0 0
    %319 = vmatprep.subr.bf16.mxu0 0
    %320 = vmatpush1.bf16.msra.mxu0 0
    %321 = vmatprep.subr.bf16.mxu0 0
    %322 = vmatpush1.bf16.msra.mxu0 0
    %323 = vmatprep.subr.bf16.mxu0 0
    %324 = vmatpush1.bf16.msra.mxu0 0
    %325 = vmatprep.subr.bf16.mxu0 0
    %326 = vmatpush1.bf16.msra.mxu0 0
    %327 = vmatprep.subr.bf16.mxu0 0
    %328 = vmatpush1.bf16.msra.mxu0 0
    %329 = vmatprep.subr.bf16.mxu0 0
    %330 = vmatpush1.bf16.msra.mxu0 0
    %331 = vmatprep.subr.bf16.mxu0 0
    %332 = vmatpush1.bf16.msra.mxu0 0
    %333 = vmatprep.mubr.bf16.mxu0 0
    %334 = vmatmul.mubr.bf16.gmra.mrb[0].mxu0 %v221
    %v335 = vpop.f32.mrb[0].mxu0
    %v336 = vadd.f32 %v155, %v335
    %v337 = vpop.f32.mrb[0].mxu0
    %v338 = vpop.f32.mrb[0].mxu0
    %v339 = vadd.f32 %v155, %v338
    %v340 = vpop.f32.mrb[0].mxu0
    %341 = vmatprep.mubr.bf16.mxu0 0
    %342 = vmatmul.mubr.bf16.gmra.mrb[0].mxu0 %v222
    %v343 = vpop.f32.mrb[0].mxu0
    %v344 = vadd.f32 %v155, %v343
    %v345 = vpop.f32.mrb[0].mxu0
    %v346 = vpop.f32.mrb[0].mxu0
    %v347 = vadd.f32 %v155, %v346
    %v348 = vpop.f32.mrb[0].mxu0
    %349 = vmatprep.mubr.bf16.mxu0 0
    %350 = vmatmul.mubr.bf16.gmra.mrb[0].mxu0 %v223
    %v351 = vpop.f32.mrb[0].mxu0
    %v352 = vadd.f32 %v155, %v351
    %v353 = vpop.f32.mrb[0].mxu0
    %v354 = vpop.f32.mrb[0].mxu0
    %v355 = vadd.f32 %v155, %v354
    %v356 = vpop.f32.mrb[0].mxu0
    %357 = vmatprep.mubr.bf16.mxu0 0
    %358 = vmatmul.mubr.bf16.gmra.mrb[0].mxu0 %v224
    %v359 = vpop.f32.mrb[0].mxu0
    %v360 = vadd.f32 %v155, %v359
    %v361 = vpop.f32.mrb[0].mxu0
    %v362 = vpop.f32.mrb[0].mxu0
    %v363 = vadd.f32 %v155, %v362
    %v364 = vpop.f32.mrb[0].mxu0
    %365 = vmatprep.mubr.bf16.mxu0 0
    %366 = vmatmul.mubr.bf16.gmra.mrb[0].mxu0 %v225
    %v367 = vpop.f32.mrb[0].mxu0
    %v368 = vadd.f32 %v155, %v367
    %v369 = vpop.f32.mrb[0].mxu0
    %v370 = vpop.f32.mrb[0].mxu0
    %v371 = vadd.f32 %v155, %v370
    %v372 = vpop.f32.mrb[0].mxu0
    %373 = vmatprep.mubr.bf16.mxu0 0
    %374 = vmatmul.mubr.bf16.gmra.mrb[0].mxu0 %v226
    %v375 = vpop.f32.mrb[0].mxu0
    %v376 = vadd.f32 %v155, %v375
    %v377 = vpop.f32.mrb[0].mxu0
    %v378 = vpop.f32.mrb[0].mxu0
    %v379 = vadd.f32 %v155, %v378
    %v380 = vpop.f32.mrb[0].mxu0
    %381 = vmatprep.mubr.bf16.mxu0 0
    %382 = vmatmul.mubr.bf16.gmra.mrb[0].mxu0 %v227
    %v383 = vpop.f32.mrb[0].mxu0
    %v384 = vadd.f32 %v155, %v383
    %v385 = vpop.f32.mrb[0].mxu0
    %v386 = vpop.f32.mrb[0].mxu0
    %v387 = vadd.f32 %v155, %v386
    %v388 = vpop.f32.mrb[0].mxu0
    %389 = vmatprep.mubr.bf16.mxu0 0
    %390 = vmatmul.mubr.bf16.gmra.mrb[0].mxu0 %v228
    %v391 = vpop.f32.mrb[0].mxu0
    %v392 = vadd.f32 %v155, %v391
    %v393 = vpop.f32.mrb[0].mxu0
    %v394 = vpop.f32.mrb[0].mxu0
    %v395 = vadd.f32 %v155, %v394
    %v396 = vpop.f32.mrb[0].mxu0
    %397 = vmatprep.mubr.bf16.mxu0 0
    %398 = vmatmul.mubr.bf16.gmra.mrb[0].mxu0 %v229
    %v399 = vpop.f32.mrb[0].mxu0
    %v400 = vadd.f32 %v155, %v399
    %v401 = vpop.f32.mrb[0].mxu0
    %v402 = vpop.f32.mrb[0].mxu0
    %v403 = vadd.f32 %v155, %v402
    %v404 = vpop.f32.mrb[0].mxu0
    %405 = vmatprep.mubr.bf16.mxu0 0
    %406 = vmatmul.mubr.bf16.gmra.mrb[0].mxu0 %v230
    %v407 = vpop.f32.mrb[0].mxu0
    %v408 = vadd.f32 %v155, %v407
    %v409 = vpop.f32.mrb[0].mxu0
    %v410 = vpop.f32.mrb[0].mxu0
    %v411 = vadd.f32 %v155, %v410
    %v412 = vpop.f32.mrb[0].mxu0
    %413 = vmatprep.mubr.bf16.mxu0 0
    %414 = vmatmul.mubr.bf16.gmra.mrb[0].mxu0 %v231
    %v415 = vpop.f32.mrb[0].mxu0
    %v416 = vadd.f32 %v155, %v415
    %v417 = vpop.f32.mrb[0].mxu0
    %v418 = vpop.f32.mrb[0].mxu0
    %v419 = vadd.f32 %v155, %v418
    %v420 = vpop.f32.mrb[0].mxu0
    %421 = vmatprep.mubr.bf16.mxu0 0
    %422 = vmatmul.mubr.bf16.gmra.mrb[0].mxu0 %v232
    %v423 = vpop.f32.mrb[0].mxu0
    %v424 = vadd.f32 %v155, %v423
    %v425 = vpop.f32.mrb[0].mxu0
    %v426 = vpop.f32.mrb[0].mxu0
    %v427 = vadd.f32 %v155, %v426
    %v428 = vpop.f32.mrb[0].mxu0
    %429 = vmatprep.mubr.bf16.mxu0 0
    %430 = vmatmul.mubr.bf16.gmra.mrb[0].mxu0 %v233
    %v431 = vpop.f32.mrb[0].mxu0
    %v432 = vadd.f32 %v155, %v431
    %v433 = vpop.f32.mrb[0].mxu0
    %v434 = vpop.f32.mrb[0].mxu0
    %v435 = vadd.f32 %v155, %v434
    %v436 = vpop.f32.mrb[0].mxu0
    %437 = vmatprep.mubr.bf16.mxu0 0
    %438 = vmatmul.mubr.bf16.gmra.mrb[0].mxu0 %v234
    %v439 = vpop.f32.mrb[0].mxu0
    %v440 = vadd.f32 %v155, %v439
    %v441 = vpop.f32.mrb[0].mxu0
    %v442 = vpop.f32.mrb[0].mxu0
    %v443 = vadd.f32 %v155, %v442
    %v444 = vpop.f32.mrb[0].mxu0
    %445 = vmatprep.mubr.bf16.mxu0 0
    %446 = vmatmul.mubr.bf16.gmra.mrb[0].mxu0 %v235
    %v447 = vpop.f32.mrb[0].mxu0
    %v448 = vadd.f32 %v155, %v447
    %v449 = vpop.f32.mrb[0].mxu0
    %v450 = vpop.f32.mrb[0].mxu0
    %v451 = vadd.f32 %v155, %v450
    %v452 = vpop.f32.mrb[0].mxu0
    %453 = vmatprep.mubr.bf16.mxu0 0
    %454 = vmatmul.mubr.bf16.gmra.mrb[0].mxu0 %v236
    %v455 = vpop.f32.mrb[0].mxu0
    %v456 = vadd.f32 %v155, %v455
    %v457 = vpop.f32.mrb[0].mxu0
    %v458 = vpop.f32.mrb[0].mxu0
    %v459 = vadd.f32 %v155, %v458
    %v460 = vpop.f32.mrb[0].mxu0
    %461 = vdwg.mxu0
    %v462 = vmax.f32 %v336, 0.0
    %v463 = vmax.f32 %v339, 0.0
    %v464 = vmax.f32 %v344, 0.0
    %v465 = vmax.f32 %v347, 0.0
    %v466 = vmax.f32 %v352, 0.0
    %v467 = vmax.f32 %v355, 0.0
    %v468 = vmax.f32 %v360, 0.0
    %v469 = vmax.f32 %v363, 0.0
    %v470 = vmax.f32 %v368, 0.0
    %v471 = vmax.f32 %v371, 0.0
    %v472 = vmax.f32 %v376, 0.0
    %v473 = vmax.f32 %v379, 0.0
    %v474 = vmax.f32 %v384, 0.0
    %v475 = vmax.f32 %v387, 0.0
    %v476 = vmax.f32 %v392, 0.0
    %v477 = vmax.f32 %v395, 0.0
    %v478 = vmax.f32 %v400, 0.0
    %v479 = vmax.f32 %v403, 0.0
    %v480 = vmax.f32 %v408, 0.0
    %v481 = vmax.f32 %v411, 0.0
    %v482 = vmax.f32 %v416, 0.0
    %v483 = vmax.f32 %v419, 0.0
    %v484 = vmax.f32 %v424, 0.0
    %v485 = vmax.f32 %v427, 0.0
    %v486 = vmax.f32 %v432, 0.0
    %v487 = vmax.f32 %v435, 0.0
    %v488 = vmax.f32 %v440, 0.0
    %v489 = vmax.f32 %v443, 0.0
    %v490 = vmax.f32 %v448, 0.0
    %v491 = vmax.f32 %v451, 0.0
    %v492 = vmax.f32 %v456, 0.0
    %v493 = vmax.f32 %v459, 0.0
    %v494 = vpack.c.bf16 %v463, %v462
    %v495 = vpack.c.bf16 %v465, %v464
    %v496 = vpack.c.bf16 %v467, %v466
    %v497 = vpack.c.bf16 %v469, %v468
    %v498 = vpack.c.bf16 %v471, %v470
    %v499 = vpack.c.bf16 %v473, %v472
    %v500 = vpack.c.bf16 %v475, %v474
    %v501 = vpack.c.bf16 %v477, %v476
    %v502 = vpack.c.bf16 %v479, %v478
    %v503 = vpack.c.bf16 %v481, %v480
    %v504 = vpack.c.bf16 %v483, %v482
    %v505 = vpack.c.bf16 %v485, %v484
    %v506 = vpack.c.bf16 %v487, %v486
    %v507 = vpack.c.bf16 %v489, %v488
    %v508 = vpack.c.bf16 %v491, %v490
    %v509 = vpack.c.bf16 %v493, %v492
    %v510 = vld [vmem:[#allocation7] sm:$0xf]
    %v511 = vld [vmem:[#allocation7 + $0x4] sm:$0xf]
    %v512 = vld [vmem:[#allocation7 + $0x8] sm:$0xf]
    %v513 = vld [vmem:[#allocation7 + $0xc] sm:$0xf]
    %v514 = vld [vmem:[#allocation7 + $0x10] sm:$0xf]
    %v515 = vld [vmem:[#allocation7 + $0x14] sm:$0xf]
    %v516 = vld [vmem:[#allocation7 + $0x18] sm:$0xf]
    %v517 = vld [vmem:[#allocation7 + $0x1c] sm:$0xf]
    %v518 = vld [vmem:[#allocation7 + $0x20] sm:$0xf]
    %v519 = vld [vmem:[#allocation7 + $0x24] sm:$0xf]
    %v520 = vld [vmem:[#allocation7 + $0x28] sm:$0xf]
    %v521 = vld [vmem:[#allocation7 + $0x2c] sm:$0xf]
    %v522 = vld [vmem:[#allocation7 + $0x30] sm:$0xf]
    %v523 = vld [vmem:[#allocation7 + $0x34] sm:$0xf]
    %v524 = vld [vmem:[#allocation7 + $0x38] sm:$0xf]
    %v525 = vld [vmem:[#allocation7 + $0x3c] sm:$0xf]
    %v526 = vld [vmem:[%s4] sm:$0x1]
    %v528 = vlaneseq
    %v529 = vshrl.u32 %v528, 7
    %v530 = vsub.s32 0, %v529
    %v531 = vrot.slane %v526, %v530
    %v549 = vunpack.c.l.b16 %v510
    %v550 = vunpack.c.l.b16 %v511
    %v551 = vunpack.c.l.b16 %v512
    %v552 = vunpack.c.l.b16 %v513
    %v553 = vunpack.c.l.b16 %v514
    %v554 = vunpack.c.l.b16 %v515
    %v555 = vunpack.c.l.b16 %v516
    %v556 = vunpack.c.l.b16 %v517
    %v557 = vunpack.c.l.b16 %v518
    %v558 = vunpack.c.l.b16 %v519
    %v559 = vunpack.c.l.b16 %v520
    %v560 = vunpack.c.l.b16 %v521
    %v561 = vunpack.c.l.b16 %v522
    %v562 = vunpack.c.l.b16 %v523
    %v563 = vunpack.c.l.b16 %v524
    %v564 = vunpack.c.l.b16 %v525
    %v565 = vpack.c.b16 %v550, %v549
    %v566 = vpack.c.b16 %v552, %v551
    %v567 = vpack.c.b16 %v554, %v553
    %v568 = vpack.c.b16 %v556, %v555
    %v569 = vpack.c.b16 %v558, %v557
    %v570 = vpack.c.b16 %v560, %v559
    %v571 = vpack.c.b16 %v562, %v561
    %v572 = vpack.c.b16 %v564, %v563
    %581 = vmatprep.subr.bf16.mxu0 0
    %582 = vmatpush1.bf16.msra.mxu0 %v565
    %583 = vmatprep.subr.bf16.mxu0 0
    %584 = vmatpush1.bf16.msra.mxu0 %v566
    %585 = vmatprep.subr.bf16.mxu0 0
    %586 = vmatpush1.bf16.msra.mxu0 %v567
    %587 = vmatprep.subr.bf16.mxu0 0
    %588 = vmatpush1.bf16.msra.mxu0 %v568
    %589 = vmatprep.subr.bf16.mxu0 0
    %590 = vmatpush1.bf16.msra.mxu0 %v569
    %591 = vmatprep.subr.bf16.mxu0 0
    %592 = vmatpush1.bf16.msra.mxu0 %v570
    %593 = vmatprep.subr.bf16.mxu0 0
    %594 = vmatpush1.bf16.msra.mxu0 %v571
    %595 = vmatprep.subr.bf16.mxu0 0
    %596 = vmatpush1.bf16.msra.mxu0 %v572
    %597 = vmatprep.subr.bf16.mxu0 0
    %598 = vmatpush1.bf16.msra.mxu0 0
    %599 = vmatprep.subr.bf16.mxu0 0
    %600 = vmatpush1.bf16.msra.mxu0 0
    %601 = vmatprep.subr.bf16.mxu0 0
    %602 = vmatpush1.bf16.msra.mxu0 0
    %603 = vmatprep.subr.bf16.mxu0 0
    %604 = vmatpush1.bf16.msra.mxu0 0
    %605 = vmatprep.subr.bf16.mxu0 0
    %606 = vmatpush1.bf16.msra.mxu0 0
    %607 = vmatprep.subr.bf16.mxu0 0
    %608 = vmatpush1.bf16.msra.mxu0 0
    %609 = vmatprep.subr.bf16.mxu0 0
    %610 = vmatpush1.bf16.msra.mxu0 0
    %611 = vmatprep.subr.bf16.mxu0 0
    %612 = vmatpush1.bf16.msra.mxu0 0
    %613 = vmatprep.mubr.bf16.mxu0 0
    %614 = vmatmul.mubr.bf16.gmra.mrb[0].mxu0 %v494
    %v615 = vpop.f32.mrb[0].mxu0
    %v616 = vadd.f32 %v531, %v615
    %v617 = vpop.f32.mrb[0].mxu0
    %v618 = vpop.f32.mrb[0].mxu0
    %v619 = vadd.f32 %v531, %v618
    %v620 = vpop.f32.mrb[0].mxu0
    %621 = vmatprep.mubr.bf16.mxu0 0
    %622 = vmatmul.mubr.bf16.gmra.mrb[0].mxu0 %v495
    %v623 = vpop.f32.mrb[0].mxu0
    %v624 = vadd.f32 %v531, %v623
    %v625 = vpop.f32.mrb[0].mxu0
    %v626 = vpop.f32.mrb[0].mxu0
    %v627 = vadd.f32 %v531, %v626
    %v628 = vpop.f32.mrb[0].mxu0
    %629 = vmatprep.mubr.bf16.mxu0 0
    %630 = vmatmul.mubr.bf16.gmra.mrb[0].mxu0 %v496
    %v631 = vpop.f32.mrb[0].mxu0
    %v632 = vadd.f32 %v531, %v631
    %v633 = vpop.f32.mrb[0].mxu0
    %v634 = vpop.f32.mrb[0].mxu0
    %v635 = vadd.f32 %v531, %v634
    %v636 = vpop.f32.mrb[0].mxu0
    %637 = vmatprep.mubr.bf16.mxu0 0
    %638 = vmatmul.mubr.bf16.gmra.mrb[0].mxu0 %v497
    %v639 = vpop.f32.mrb[0].mxu0
    %v640 = vadd.f32 %v531, %v639
    %v641 = vpop.f32.mrb[0].mxu0
    %v642 = vpop.f32.mrb[0].mxu0
    %v643 = vadd.f32 %v531, %v642
    %v644 = vpop.f32.mrb[0].mxu0
    %645 = vmatprep.mubr.bf16.mxu0 0
    %646 = vmatmul.mubr.bf16.gmra.mrb[0].mxu0 %v498
    %v647 = vpop.f32.mrb[0].mxu0
    %v648 = vadd.f32 %v531, %v647
    %v649 = vpop.f32.mrb[0].mxu0
    %v650 = vpop.f32.mrb[0].mxu0
    %v651 = vadd.f32 %v531, %v650
    %v652 = vpop.f32.mrb[0].mxu0
    %653 = vmatprep.mubr.bf16.mxu0 0
    %654 = vmatmul.mubr.bf16.gmra.mrb[0].mxu0 %v499
    %v655 = vpop.f32.mrb[0].mxu0
    %v656 = vadd.f32 %v531, %v655
    %v657 = vpop.f32.mrb[0].mxu0
    %v658 = vpop.f32.mrb[0].mxu0
    %v659 = vadd.f32 %v531, %v658
    %v660 = vpop.f32.mrb[0].mxu0
    %661 = vmatprep.mubr.bf16.mxu0 0
    %662 = vmatmul.mubr.bf16.gmra.mrb[0].mxu0 %v500
    %v663 = vpop.f32.mrb[0].mxu0
    %v664 = vadd.f32 %v531, %v663
    %v665 = vpop.f32.mrb[0].mxu0
    %v666 = vpop.f32.mrb[0].mxu0
    %v667 = vadd.f32 %v531, %v666
    %v668 = vpop.f32.mrb[0].mxu0
    %669 = vmatprep.mubr.bf16.mxu0 0
    %670 = vmatmul.mubr.bf16.gmra.mrb[0].mxu0 %v501
    %v671 = vpop.f32.mrb[0].mxu0
    %v672 = vadd.f32 %v531, %v671
    %v673 = vpop.f32.mrb[0].mxu0
    %v674 = vpop.f32.mrb[0].mxu0
    %v675 = vadd.f32 %v531, %v674
    %v676 = vpop.f32.mrb[0].mxu0
    %677 = vmatprep.mubr.bf16.mxu0 0
    %678 = vmatmul.mubr.bf16.gmra.mrb[0].mxu0 %v502
    %v679 = vpop.f32.mrb[0].mxu0
    %v680 = vadd.f32 %v531, %v679
    %v681 = vpop.f32.mrb[0].mxu0
    %v682 = vpop.f32.mrb[0].mxu0
    %v683 = vadd.f32 %v531, %v682
    %v684 = vpop.f32.mrb[0].mxu0
    %685 = vmatprep.mubr.bf16.mxu0 0
    %686 = vmatmul.mubr.bf16.gmra.mrb[0].mxu0 %v503
    %v687 = vpop.f32.mrb[0].mxu0
    %v688 = vadd.f32 %v531, %v687
    %v689 = vpop.f32.mrb[0].mxu0
    %v690 = vpop.f32.mrb[0].mxu0
    %v691 = vadd.f32 %v531, %v690
    %v692 = vpop.f32.mrb[0].mxu0
    %693 = vmatprep.mubr.bf16.mxu0 0
    %694 = vmatmul.mubr.bf16.gmra.mrb[0].mxu0 %v504
    %v695 = vpop.f32.mrb[0].mxu0
    %v696 = vadd.f32 %v531, %v695
    %v697 = vpop.f32.mrb[0].mxu0
    %v698 = vpop.f32.mrb[0].mxu0
    %v699 = vadd.f32 %v531, %v698
    %v700 = vpop.f32.mrb[0].mxu0
    %701 = vmatprep.mubr.bf16.mxu0 0
    %702 = vmatmul.mubr.bf16.gmra.mrb[0].mxu0 %v505
    %v703 = vpop.f32.mrb[0].mxu0
    %v704 = vadd.f32 %v531, %v703
    %v705 = vpop.f32.mrb[0].mxu0
    %v706 = vpop.f32.mrb[0].mxu0
    %v707 = vadd.f32 %v531, %v706
    %v708 = vpop.f32.mrb[0].mxu0
    %709 = vmatprep.mubr.bf16.mxu0 0
    %710 = vmatmul.mubr.bf16.gmra.mrb[0].mxu0 %v506
    %v711 = vpop.f32.mrb[0].mxu0
    %v712 = vadd.f32 %v531, %v711
    %v713 = vpop.f32.mrb[0].mxu0
    %v714 = vpop.f32.mrb[0].mxu0
    %v715 = vadd.f32 %v531, %v714
    %v716 = vpop.f32.mrb[0].mxu0
    %717 = vmatprep.mubr.bf16.mxu0 0
    %718 = vmatmul.mubr.bf16.gmra.mrb[0].mxu0 %v507
    %v719 = vpop.f32.mrb[0].mxu0
    %v720 = vadd.f32 %v531, %v719
    %v721 = vpop.f32.mrb[0].mxu0
    %v722 = vpop.f32.mrb[0].mxu0
    %v723 = vadd.f32 %v531, %v722
    %v724 = vpop.f32.mrb[0].mxu0
    %725 = vmatprep.mubr.bf16.mxu0 0
    %726 = vmatmul.mubr.bf16.gmra.mrb[0].mxu0 %v508
    %v727 = vpop.f32.mrb[0].mxu0
    %v728 = vadd.f32 %v531, %v727
    %v729 = vpop.f32.mrb[0].mxu0
    %v730 = vpop.f32.mrb[0].mxu0
    %v731 = vadd.f32 %v531, %v730
    %v732 = vpop.f32.mrb[0].mxu0
    %733 = vmatprep.mubr.bf16.mxu0 0
    %734 = vmatmul.mubr.bf16.gmra.mrb[0].mxu0 %v509
    %v735 = vpop.f32.mrb[0].mxu0
    %v736 = vadd.f32 %v531, %v735
    %v737 = vpop.f32.mrb[0].mxu0
    %v738 = vpop.f32.mrb[0].mxu0
    %v739 = vadd.f32 %v531, %v738
    %v740 = vpop.f32.mrb[0].mxu0
    %741 = vdwg.mxu0
    %v742 = vmax.f32 %v616, 0.0
    %v743 = vmax.f32 %v619, 0.0
    %v744 = vmax.f32 %v624, 0.0
    %v745 = vmax.f32 %v627, 0.0
    %v746 = vmax.f32 %v632, 0.0
    %v747 = vmax.f32 %v635, 0.0
    %v748 = vmax.f32 %v640, 0.0
    %v749 = vmax.f32 %v643, 0.0
    %v750 = vmax.f32 %v648, 0.0
    %v751 = vmax.f32 %v651, 0.0
    %v752 = vmax.f32 %v656, 0.0
    %v753 = vmax.f32 %v659, 0.0
    %v754 = vmax.f32 %v664, 0.0
    %v755 = vmax.f32 %v667, 0.0
    %v756 = vmax.f32 %v672, 0.0
    %v757 = vmax.f32 %v675, 0.0
    %v758 = vmax.f32 %v680, 0.0
    %v759 = vmax.f32 %v683, 0.0
    %v760 = vmax.f32 %v688, 0.0
    %v761 = vmax.f32 %v691, 0.0
    %v762 = vmax.f32 %v696, 0.0
    %v763 = vmax.f32 %v699, 0.0
    %v764 = vmax.f32 %v704, 0.0
    %v765 = vmax.f32 %v707, 0.0
    %v766 = vmax.f32 %v712, 0.0
    %v767 = vmax.f32 %v715, 0.0
    %v768 = vmax.f32 %v720, 0.0
    %v769 = vmax.f32 %v723, 0.0
    %v770 = vmax.f32 %v728, 0.0
    %v771 = vmax.f32 %v731, 0.0
    %v772 = vmax.f32 %v736, 0.0
    %v773 = vmax.f32 %v739, 0.0
    %v774 = vpack.c.bf16 %v743, %v742
    %v775 = vpack.c.bf16 %v745, %v744
    %v776 = vpack.c.bf16 %v747, %v746
    %v777 = vpack.c.bf16 %v749, %v748
    %v778 = vpack.c.bf16 %v751, %v750
    %v779 = vpack.c.bf16 %v753, %v752
    %v780 = vpack.c.bf16 %v755, %v754
    %v781 = vpack.c.bf16 %v757, %v756
    %v782 = vpack.c.bf16 %v759, %v758
    %v783 = vpack.c.bf16 %v761, %v760
    %v784 = vpack.c.bf16 %v763, %v762
    %v785 = vpack.c.bf16 %v765, %v764
    %v786 = vpack.c.bf16 %v767, %v766
    %v787 = vpack.c.bf16 %v769, %v768
    %v788 = vpack.c.bf16 %v771, %v770
    %v789 = vpack.c.bf16 %v773, %v772
    %v790 = vld [vmem:[#allocation8] sm:$0xf]
    %v791 = vld [vmem:[#allocation8 + $0x4] sm:$0xf]
    %v792 = vld [vmem:[#allocation8 + $0x8] sm:$0xf]
    %v793 = vld [vmem:[#allocation8 + $0xc] sm:$0xf]
    %v794 = vld [vmem:[#allocation8 + $0x10] sm:$0xf]
    %v795 = vld [vmem:[#allocation8 + $0x14] sm:$0xf]
    %v796 = vld [vmem:[#allocation8 + $0x18] sm:$0xf]
    %v797 = vld [vmem:[#allocation8 + $0x1c] sm:$0xf]
    %v798 = vld [vmem:[#allocation8 + $0x20] sm:$0xf]
    %v799 = vld [vmem:[#allocation8 + $0x24] sm:$0xf]
    %v800 = vld [vmem:[#allocation8 + $0x28] sm:$0xf]
    %v801 = vld [vmem:[#allocation8 + $0x2c] sm:$0xf]
    %v802 = vld [vmem:[#allocation8 + $0x30] sm:$0xf]
    %v803 = vld [vmem:[#allocation8 + $0x34] sm:$0xf]
    %v804 = vld [vmem:[#allocation8 + $0x38] sm:$0xf]
    %v805 = vld [vmem:[#allocation8 + $0x3c] sm:$0xf]
    %v806 = vld [vmem:[%s6] sm:$0x1]
    %v808 = vlaneseq
    %v809 = vshrl.u32 %v808, 7
    %v810 = vsub.s32 0, %v809
    %v811 = vrot.slane %v806, %v810
    %v829 = vunpack.c.l.b16 %v790
    %v830 = vunpack.c.l.b16 %v791
    %v831 = vunpack.c.l.b16 %v792
    %v832 = vunpack.c.l.b16 %v793
    %v833 = vunpack.c.l.b16 %v794
    %v834 = vunpack.c.l.b16 %v795
    %v835 = vunpack.c.l.b16 %v796
    %v836 = vunpack.c.l.b16 %v797
    %v837 = vunpack.c.l.b16 %v798
    %v838 = vunpack.c.l.b16 %v799
    %v839 = vunpack.c.l.b16 %v800
    %v840 = vunpack.c.l.b16 %v801
    %v841 = vunpack.c.l.b16 %v802
    %v842 = vunpack.c.l.b16 %v803
    %v843 = vunpack.c.l.b16 %v804
    %v844 = vunpack.c.l.b16 %v805
    %v845 = vpack.c.b16 %v830, %v829
    %v846 = vpack.c.b16 %v832, %v831
    %v847 = vpack.c.b16 %v834, %v833
    %v848 = vpack.c.b16 %v836, %v835
    %v849 = vpack.c.b16 %v838, %v837
    %v850 = vpack.c.b16 %v840, %v839
    %v851 = vpack.c.b16 %v842, %v841
    %v852 = vpack.c.b16 %v844, %v843
    %861 = vmatprep.subr.bf16.mxu0 0
    %862 = vmatpush1.bf16.msra.mxu0 %v845
    %863 = vmatprep.subr.bf16.mxu0 0
    %864 = vmatpush1.bf16.msra.mxu0 %v846
    %865 = vmatprep.subr.bf16.mxu0 0
    %866 = vmatpush1.bf16.msra.mxu0 %v847
    %867 = vmatprep.subr.bf16.mxu0 0
    %868 = vmatpush1.bf16.msra.mxu0 %v848
    %869 = vmatprep.subr.bf16.mxu0 0
    %870 = vmatpush1.bf16.msra.mxu0 %v849
    %871 = vmatprep.subr.bf16.mxu0 0
    %872 = vmatpush1.bf16.msra.mxu0 %v850
    %873 = vmatprep.subr.bf16.mxu0 0
    %874 = vmatpush1.bf16.msra.mxu0 %v851
    %875 = vmatprep.subr.bf16.mxu0 0
    %876 = vmatpush1.bf16.msra.mxu0 %v852
    %877 = vmatprep.subr.bf16.mxu0 0
    %878 = vmatpush1.bf16.msra.mxu0 0
    %879 = vmatprep.subr.bf16.mxu0 0
    %880 = vmatpush1.bf16.msra.mxu0 0
    %881 = vmatprep.subr.bf16.mxu0 0
    %882 = vmatpush1.bf16.msra.mxu0 0
    %883 = vmatprep.subr.bf16.mxu0 0
    %884 = vmatpush1.bf16.msra.mxu0 0
    %885 = vmatprep.subr.bf16.mxu0 0
    %886 = vmatpush1.bf16.msra.mxu0 0
    %887 = vmatprep.subr.bf16.mxu0 0
    %888 = vmatpush1.bf16.msra.mxu0 0
    %889 = vmatprep.subr.bf16.mxu0 0
    %890 = vmatpush1.bf16.msra.mxu0 0
    %891 = vmatprep.subr.bf16.mxu0 0
    %892 = vmatpush1.bf16.msra.mxu0 0
    %893 = vmatprep.mubr.bf16.mxu0 0
    %894 = vmatmul.mubr.bf16.gmra.mrb[0].mxu0 %v774
    %v895 = vpop.f32.mrb[0].mxu0
    %v896 = vadd.f32 %v811, %v895
    %v897 = vpop.f32.mrb[0].mxu0
    %v898 = vpop.f32.mrb[0].mxu0
    %v899 = vadd.f32 %v811, %v898
    %v900 = vpop.f32.mrb[0].mxu0
    %901 = vmatprep.mubr.bf16.mxu0 0
    %902 = vmatmul.mubr.bf16.gmra.mrb[0].mxu0 %v775
    %v903 = vpop.f32.mrb[0].mxu0
    %v904 = vadd.f32 %v811, %v903
    %v905 = vpop.f32.mrb[0].mxu0
    %v906 = vpop.f32.mrb[0].mxu0
    %v907 = vadd.f32 %v811, %v906
    %v908 = vpop.f32.mrb[0].mxu0
    %909 = vmatprep.mubr.bf16.mxu0 0
    %910 = vmatmul.mubr.bf16.gmra.mrb[0].mxu0 %v776
    %v911 = vpop.f32.mrb[0].mxu0
    %v912 = vadd.f32 %v811, %v911
    %v913 = vpop.f32.mrb[0].mxu0
    %v914 = vpop.f32.mrb[0].mxu0
    %v915 = vadd.f32 %v811, %v914
    %v916 = vpop.f32.mrb[0].mxu0
    %917 = vmatprep.mubr.bf16.mxu0 0
    %918 = vmatmul.mubr.bf16.gmra.mrb[0].mxu0 %v777
    %v919 = vpop.f32.mrb[0].mxu0
    %v920 = vadd.f32 %v811, %v919
    %v921 = vpop.f32.mrb[0].mxu0
    %v922 = vpop.f32.mrb[0].mxu0
    %v923 = vadd.f32 %v811, %v922
    %v924 = vpop.f32.mrb[0].mxu0
    %925 = vmatprep.mubr.bf16.mxu0 0
    %926 = vmatmul.mubr.bf16.gmra.mrb[0].mxu0 %v778
    %v927 = vpop.f32.mrb[0].mxu0
    %v928 = vadd.f32 %v811, %v927
    %v929 = vpop.f32.mrb[0].mxu0
    %v930 = vpop.f32.mrb[0].mxu0
    %v931 = vadd.f32 %v811, %v930
    %v932 = vpop.f32.mrb[0].mxu0
    %933 = vmatprep.mubr.bf16.mxu0 0
    %934 = vmatmul.mubr.bf16.gmra.mrb[0].mxu0 %v779
    %v935 = vpop.f32.mrb[0].mxu0
    %v936 = vadd.f32 %v811, %v935
    %v937 = vpop.f32.mrb[0].mxu0
    %v938 = vpop.f32.mrb[0].mxu0
    %v939 = vadd.f32 %v811, %v938
    %v940 = vpop.f32.mrb[0].mxu0
    %941 = vmatprep.mubr.bf16.mxu0 0
    %942 = vmatmul.mubr.bf16.gmra.mrb[0].mxu0 %v780
    %v943 = vpop.f32.mrb[0].mxu0
    %v944 = vadd.f32 %v811, %v943
    %v945 = vpop.f32.mrb[0].mxu0
    %v946 = vpop.f32.mrb[0].mxu0
    %v947 = vadd.f32 %v811, %v946
    %v948 = vpop.f32.mrb[0].mxu0
    %949 = vmatprep.mubr.bf16.mxu0 0
    %950 = vmatmul.mubr.bf16.gmra.mrb[0].mxu0 %v781
    %v951 = vpop.f32.mrb[0].mxu0
    %v952 = vadd.f32 %v811, %v951
    %v953 = vpop.f32.mrb[0].mxu0
    %v954 = vpop.f32.mrb[0].mxu0
    %v955 = vadd.f32 %v811, %v954
    %v956 = vpop.f32.mrb[0].mxu0
    %957 = vmatprep.mubr.bf16.mxu0 0
    %958 = vmatmul.mubr.bf16.gmra.mrb[0].mxu0 %v782
    %v959 = vpop.f32.mrb[0].mxu0
    %v960 = vadd.f32 %v811, %v959
    %v961 = vpop.f32.mrb[0].mxu0
    %v962 = vpop.f32.mrb[0].mxu0
    %v963 = vadd.f32 %v811, %v962
    %v964 = vpop.f32.mrb[0].mxu0
    %965 = vmatprep.mubr.bf16.mxu0 0
    %966 = vmatmul.mubr.bf16.gmra.mrb[0].mxu0 %v783
    %v967 = vpop.f32.mrb[0].mxu0
    %v968 = vadd.f32 %v811, %v967
    %v969 = vpop.f32.mrb[0].mxu0
    %v970 = vpop.f32.mrb[0].mxu0
    %v971 = vadd.f32 %v811, %v970
    %v972 = vpop.f32.mrb[0].mxu0
    %973 = vmatprep.mubr.bf16.mxu0 0
    %974 = vmatmul.mubr.bf16.gmra.mrb[0].mxu0 %v784
    %v975 = vpop.f32.mrb[0].mxu0
    %v976 = vadd.f32 %v811, %v975
    %v977 = vpop.f32.mrb[0].mxu0
    %v978 = vpop.f32.mrb[0].mxu0
    %v979 = vadd.f32 %v811, %v978
    %v980 = vpop.f32.mrb[0].mxu0
    %981 = vmatprep.mubr.bf16.mxu0 0
    %982 = vmatmul.mubr.bf16.gmra.mrb[0].mxu0 %v785
    %v983 = vpop.f32.mrb[0].mxu0
    %v984 = vadd.f32 %v811, %v983
    %v985 = vpop.f32.mrb[0].mxu0
    %v986 = vpop.f32.mrb[0].mxu0
    %v987 = vadd.f32 %v811, %v986
    %v988 = vpop.f32.mrb[0].mxu0
    %989 = vmatprep.mubr.bf16.mxu0 0
    %990 = vmatmul.mubr.bf16.gmra.mrb[0].mxu0 %v786
    %v991 = vpop.f32.mrb[0].mxu0
    %v992 = vadd.f32 %v811, %v991
    %v993 = vpop.f32.mrb[0].mxu0
    %v994 = vpop.f32.mrb[0].mxu0
    %v995 = vadd.f32 %v811, %v994
    %v996 = vpop.f32.mrb[0].mxu0
    %997 = vmatprep.mubr.bf16.mxu0 0
    %998 = vmatmul.mubr.bf16.gmra.mrb[0].mxu0 %v787
    %v999 = vpop.f32.mrb[0].mxu0
    %v1000 = vadd.f32 %v811, %v999
    %v1001 = vpop.f32.mrb[0].mxu0
    %v1002 = vpop.f32.mrb[0].mxu0
    %v1003 = vadd.f32 %v811, %v1002
    %v1004 = vpop.f32.mrb[0].mxu0
    %1005 = vmatprep.mubr.bf16.mxu0 0
    %1006 = vmatmul.mubr.bf16.gmra.mrb[0].mxu0 %v788
    %v1007 = vpop.f32.mrb[0].mxu0
    %v1008 = vadd.f32 %v811, %v1007
    %v1009 = vpop.f32.mrb[0].mxu0
    %v1010 = vpop.f32.mrb[0].mxu0
    %v1011 = vadd.f32 %v811, %v1010
    %v1012 = vpop.f32.mrb[0].mxu0
    %1013 = vmatprep.mubr.bf16.mxu0 0
    %1014 = vmatmul.mubr.bf16.gmra.mrb[0].mxu0 %v789
    %v1015 = vpop.f32.mrb[0].mxu0
    %v1016 = vadd.f32 %v811, %v1015
    %v1017 = vpop.f32.mrb[0].mxu0
    %v1018 = vpop.f32.mrb[0].mxu0
    %v1019 = vadd.f32 %v811, %v1018
    %v1020 = vpop.f32.mrb[0].mxu0
    %1021 = vdwg.mxu0
    %v1022 = vmax.f32 %v896, 0.0
    %v1023 = vmax.f32 %v899, 0.0
    %v1024 = vmax.f32 %v904, 0.0
    %v1025 = vmax.f32 %v907, 0.0
    %v1026 = vmax.f32 %v912, 0.0
    %v1027 = vmax.f32 %v915, 0.0
    %v1028 = vmax.f32 %v920, 0.0
    %v1029 = vmax.f32 %v923, 0.0
    %v1030 = vmax.f32 %v928, 0.0
    %v1031 = vmax.f32 %v931, 0.0
    %v1032 = vmax.f32 %v936, 0.0
    %v1033 = vmax.f32 %v939, 0.0
    %v1034 = vmax.f32 %v944, 0.0
    %v1035 = vmax.f32 %v947, 0.0
    %v1036 = vmax.f32 %v952, 0.0
    %v1037 = vmax.f32 %v955, 0.0
    %v1038 = vmax.f32 %v960, 0.0
    %v1039 = vmax.f32 %v963, 0.0
    %v1040 = vmax.f32 %v968, 0.0
    %v1041 = vmax.f32 %v971, 0.0
    %v1042 = vmax.f32 %v976, 0.0
    %v1043 = vmax.f32 %v979, 0.0
    %v1044 = vmax.f32 %v984, 0.0
    %v1045 = vmax.f32 %v987, 0.0
    %v1046 = vmax.f32 %v992, 0.0
    %v1047 = vmax.f32 %v995, 0.0
    %v1048 = vmax.f32 %v1000, 0.0
    %v1049 = vmax.f32 %v1003, 0.0
    %v1050 = vmax.f32 %v1008, 0.0
    %v1051 = vmax.f32 %v1011, 0.0
    %v1052 = vmax.f32 %v1016, 0.0
    %v1053 = vmax.f32 %v1019, 0.0
    %v1054 = vpack.c.bf16 %v1023, %v1022
    %v1055 = vpack.c.bf16 %v1025, %v1024
    %v1056 = vpack.c.bf16 %v1027, %v1026
    %v1057 = vpack.c.bf16 %v1029, %v1028
    %v1058 = vpack.c.bf16 %v1031, %v1030
    %v1059 = vpack.c.bf16 %v1033, %v1032
    %v1060 = vpack.c.bf16 %v1035, %v1034
    %v1061 = vpack.c.bf16 %v1037, %v1036
    %v1062 = vpack.c.bf16 %v1039, %v1038
    %v1063 = vpack.c.bf16 %v1041, %v1040
    %v1064 = vpack.c.bf16 %v1043, %v1042
    %v1065 = vpack.c.bf16 %v1045, %v1044
    %v1066 = vpack.c.bf16 %v1047, %v1046
    %v1067 = vpack.c.bf16 %v1049, %v1048
    %v1068 = vpack.c.bf16 %v1051, %v1050
    %v1069 = vpack.c.bf16 %v1053, %v1052
    %v1070 = vld [vmem:[#allocation10] sm:$0xf]
    %v1071 = vld [vmem:[#allocation10 + $0x4] sm:$0xf]
    %v1072 = vld [vmem:[#allocation10 + $0x8] sm:$0xf]
    %v1073 = vld [vmem:[#allocation10 + $0xc] sm:$0xf]
    %v1074 = vld [vmem:[#allocation10 + $0x10] sm:$0xf]
    %v1075 = vld [vmem:[#allocation10 + $0x14] sm:$0xf]
    %v1076 = vld [vmem:[#allocation10 + $0x18] sm:$0xf]
    %v1077 = vld [vmem:[#allocation10 + $0x1c] sm:$0xf]
    %v1078 = vld [vmem:[#allocation10 + $0x20] sm:$0xf]
    %v1079 = vld [vmem:[#allocation10 + $0x24] sm:$0xf]
    %v1080 = vld [vmem:[#allocation10 + $0x28] sm:$0xf]
    %v1081 = vld [vmem:[#allocation10 + $0x2c] sm:$0xf]
    %v1082 = vld [vmem:[#allocation10 + $0x30] sm:$0xf]
    %v1083 = vld [vmem:[#allocation10 + $0x34] sm:$0xf]
    %v1084 = vld [vmem:[#allocation10 + $0x38] sm:$0xf]
    %v1085 = vld [vmem:[#allocation10 + $0x3c] sm:$0xf]
    %v1086 = vld [vmem:[%s8] sm:$0x1]
    %v1088 = vlaneseq
    %v1089 = vshrl.u32 %v1088, 7
    %v1090 = vsub.s32 0, %v1089
    %v1091 = vrot.slane %v1086, %v1090
    %v1109 = vunpack.c.l.b16 %v1070
    %v1110 = vunpack.c.l.b16 %v1071
    %v1111 = vunpack.c.l.b16 %v1072
    %v1112 = vunpack.c.l.b16 %v1073
    %v1113 = vunpack.c.l.b16 %v1074
    %v1114 = vunpack.c.l.b16 %v1075
    %v1115 = vunpack.c.l.b16 %v1076
    %v1116 = vunpack.c.l.b16 %v1077
    %v1117 = vunpack.c.l.b16 %v1078
    %v1118 = vunpack.c.l.b16 %v1079
    %v1119 = vunpack.c.l.b16 %v1080
    %v1120 = vunpack.c.l.b16 %v1081
    %v1121 = vunpack.c.l.b16 %v1082
    %v1122 = vunpack.c.l.b16 %v1083
    %v1123 = vunpack.c.l.b16 %v1084
    %v1124 = vunpack.c.l.b16 %v1085
    %v1125 = vpack.c.b16 %v1110, %v1109
    %v1126 = vpack.c.b16 %v1112, %v1111
    %v1127 = vpack.c.b16 %v1114, %v1113
    %v1128 = vpack.c.b16 %v1116, %v1115
    %v1129 = vpack.c.b16 %v1118, %v1117
    %v1130 = vpack.c.b16 %v1120, %v1119
    %v1131 = vpack.c.b16 %v1122, %v1121
    %v1132 = vpack.c.b16 %v1124, %v1123
    %1141 = vmatprep.subr.bf16.mxu0 0
    %1142 = vmatpush1.bf16.msra.mxu0 %v1125
    %1143 = vmatprep.subr.bf16.mxu0 0
    %1144 = vmatpush1.bf16.msra.mxu0 %v1126
    %1145 = vmatprep.subr.bf16.mxu0 0
    %1146 = vmatpush1.bf16.msra.mxu0 %v1127
    %1147 = vmatprep.subr.bf16.mxu0 0
    %1148 = vmatpush1.bf16.msra.mxu0 %v1128
    %1149 = vmatprep.subr.bf16.mxu0 0
    %1150 = vmatpush1.bf16.msra.mxu0 %v1129
    %1151 = vmatprep.subr.bf16.mxu0 0
    %1152 = vmatpush1.bf16.msra.mxu0 %v1130
    %1153 = vmatprep.subr.bf16.mxu0 0
    %1154 = vmatpush1.bf16.msra.mxu0 %v1131
    %1155 = vmatprep.subr.bf16.mxu0 0
    %1156 = vmatpush1.bf16.msra.mxu0 %v1132
    %1157 = vmatprep.subr.bf16.mxu0 0
    %1158 = vmatpush1.bf16.msra.mxu0 0
    %1159 = vmatprep.subr.bf16.mxu0 0
    %1160 = vmatpush1.bf16.msra.mxu0 0
    %1161 = vmatprep.subr.bf16.mxu0 0
    %1162 = vmatpush1.bf16.msra.mxu0 0
    %1163 = vmatprep.subr.bf16.mxu0 0
    %1164 = vmatpush1.bf16.msra.mxu0 0
    %1165 = vmatprep.subr.bf16.mxu0 0
    %1166 = vmatpush1.bf16.msra.mxu0 0
    %1167 = vmatprep.subr.bf16.mxu0 0
    %1168 = vmatpush1.bf16.msra.mxu0 0
    %1169 = vmatprep.subr.bf16.mxu0 0
    %1170 = vmatpush1.bf16.msra.mxu0 0
    %1171 = vmatprep.subr.bf16.mxu0 0
    %1172 = vmatpush1.bf16.msra.mxu0 0
    %1173 = vmatprep.mubr.bf16.mxu0 0
    %1174 = vmatmul.mubr.bf16.gmra.mrb[0].mxu0 %v1054
    %v1175 = vpop.f32.mrb[0].mxu0
    %v1176 = vadd.f32 %v1091, %v1175
    %v1177 = vpop.f32.mrb[0].mxu0
    %v1178 = vpop.f32.mrb[0].mxu0
    %v1179 = vadd.f32 %v1091, %v1178
    %v1180 = vpop.f32.mrb[0].mxu0
    %1181 = vmatprep.mubr.bf16.mxu0 0
    %1182 = vmatmul.mubr.bf16.gmra.mrb[0].mxu0 %v1055
    %v1183 = vpop.f32.mrb[0].mxu0
    %v1184 = vadd.f32 %v1091, %v1183
    %v1185 = vpop.f32.mrb[0].mxu0
    %v1186 = vpop.f32.mrb[0].mxu0
    %v1187 = vadd.f32 %v1091, %v1186
    %v1188 = vpop.f32.mrb[0].mxu0
    %1189 = vmatprep.mubr.bf16.mxu0 0
    %1190 = vmatmul.mubr.bf16.gmra.mrb[0].mxu0 %v1056
    %v1191 = vpop.f32.mrb[0].mxu0
    %v1192 = vadd.f32 %v1091, %v1191
    %v1193 = vpop.f32.mrb[0].mxu0
    %v1194 = vpop.f32.mrb[0].mxu0
    %v1195 = vadd.f32 %v1091, %v1194
    %v1196 = vpop.f32.mrb[0].mxu0
    %1197 = vmatprep.mubr.bf16.mxu0 0
    %1198 = vmatmul.mubr.bf16.gmra.mrb[0].mxu0 %v1057
    %v1199 = vpop.f32.mrb[0].mxu0
    %v1200 = vadd.f32 %v1091, %v1199
    %v1201 = vpop.f32.mrb[0].mxu0
    %v1202 = vpop.f32.mrb[0].mxu0
    %v1203 = vadd.f32 %v1091, %v1202
    %v1204 = vpop.f32.mrb[0].mxu0
    %1205 = vmatprep.mubr.bf16.mxu0 0
    %1206 = vmatmul.mubr.bf16.gmra.mrb[0].mxu0 %v1058
    %v1207 = vpop.f32.mrb[0].mxu0
    %v1208 = vadd.f32 %v1091, %v1207
    %v1209 = vpop.f32.mrb[0].mxu0
    %v1210 = vpop.f32.mrb[0].mxu0
    %v1211 = vadd.f32 %v1091, %v1210
    %v1212 = vpop.f32.mrb[0].mxu0
    %1213 = vmatprep.mubr.bf16.mxu0 0
    %1214 = vmatmul.mubr.bf16.gmra.mrb[0].mxu0 %v1059
    %v1215 = vpop.f32.mrb[0].mxu0
    %v1216 = vadd.f32 %v1091, %v1215
    %v1217 = vpop.f32.mrb[0].mxu0
    %v1218 = vpop.f32.mrb[0].mxu0
    %v1219 = vadd.f32 %v1091, %v1218
    %v1220 = vpop.f32.mrb[0].mxu0
    %1221 = vmatprep.mubr.bf16.mxu0 0
    %1222 = vmatmul.mubr.bf16.gmra.mrb[0].mxu0 %v1060
    %v1223 = vpop.f32.mrb[0].mxu0
    %v1224 = vadd.f32 %v1091, %v1223
    %v1225 = vpop.f32.mrb[0].mxu0
    %v1226 = vpop.f32.mrb[0].mxu0
    %v1227 = vadd.f32 %v1091, %v1226
    %v1228 = vpop.f32.mrb[0].mxu0
    %1229 = vmatprep.mubr.bf16.mxu0 0
    %1230 = vmatmul.mubr.bf16.gmra.mrb[0].mxu0 %v1061
    %v1231 = vpop.f32.mrb[0].mxu0
    %v1232 = vadd.f32 %v1091, %v1231
    %v1233 = vpop.f32.mrb[0].mxu0
    %v1234 = vpop.f32.mrb[0].mxu0
    %v1235 = vadd.f32 %v1091, %v1234
    %v1236 = vpop.f32.mrb[0].mxu0
    %1237 = vmatprep.mubr.bf16.mxu0 0
    %1238 = vmatmul.mubr.bf16.gmra.mrb[0].mxu0 %v1062
    %v1239 = vpop.f32.mrb[0].mxu0
    %v1240 = vadd.f32 %v1091, %v1239
    %v1241 = vpop.f32.mrb[0].mxu0
    %v1242 = vpop.f32.mrb[0].mxu0
    %v1243 = vadd.f32 %v1091, %v1242
    %v1244 = vpop.f32.mrb[0].mxu0
    %1245 = vmatprep.mubr.bf16.mxu0 0
    %1246 = vmatmul.mubr.bf16.gmra.mrb[0].mxu0 %v1063
    %v1247 = vpop.f32.mrb[0].mxu0
    %v1248 = vadd.f32 %v1091, %v1247
    %v1249 = vpop.f32.mrb[0].mxu0
    %v1250 = vpop.f32.mrb[0].mxu0
    %v1251 = vadd.f32 %v1091, %v1250
    %v1252 = vpop.f32.mrb[0].mxu0
    %1253 = vmatprep.mubr.bf16.mxu0 0
    %1254 = vmatmul.mubr.bf16.gmra.mrb[0].mxu0 %v1064
    %v1255 = vpop.f32.mrb[0].mxu0
    %v1256 = vadd.f32 %v1091, %v1255
    %v1257 = vpop.f32.mrb[0].mxu0
    %v1258 = vpop.f32.mrb[0].mxu0
    %v1259 = vadd.f32 %v1091, %v1258
    %v1260 = vpop.f32.mrb[0].mxu0
    %1261 = vmatprep.mubr.bf16.mxu0 0
    %1262 = vmatmul.mubr.bf16.gmra.mrb[0].mxu0 %v1065
    %v1263 = vpop.f32.mrb[0].mxu0
    %v1264 = vadd.f32 %v1091, %v1263
    %v1265 = vpop.f32.mrb[0].mxu0
    %v1266 = vpop.f32.mrb[0].mxu0
    %v1267 = vadd.f32 %v1091, %v1266
    %v1268 = vpop.f32.mrb[0].mxu0
    %1269 = vmatprep.mubr.bf16.mxu0 0
    %1270 = vmatmul.mubr.bf16.gmra.mrb[0].mxu0 %v1066
    %v1271 = vpop.f32.mrb[0].mxu0
    %v1272 = vadd.f32 %v1091, %v1271
    %v1273 = vpop.f32.mrb[0].mxu0
    %v1274 = vpop.f32.mrb[0].mxu0
    %v1275 = vadd.f32 %v1091, %v1274
    %v1276 = vpop.f32.mrb[0].mxu0
    %1277 = vmatprep.mubr.bf16.mxu0 0
    %1278 = vmatmul.mubr.bf16.gmra.mrb[0].mxu0 %v1067
    %v1279 = vpop.f32.mrb[0].mxu0
    %v1280 = vadd.f32 %v1091, %v1279
    %v1281 = vpop.f32.mrb[0].mxu0
    %v1282 = vpop.f32.mrb[0].mxu0
    %v1283 = vadd.f32 %v1091, %v1282
    %v1284 = vpop.f32.mrb[0].mxu0
    %1285 = vmatprep.mubr.bf16.mxu0 0
    %1286 = vmatmul.mubr.bf16.gmra.mrb[0].mxu0 %v1068
    %v1287 = vpop.f32.mrb[0].mxu0
    %v1288 = vadd.f32 %v1091, %v1287
    %v1289 = vpop.f32.mrb[0].mxu0
    %v1290 = vpop.f32.mrb[0].mxu0
    %v1291 = vadd.f32 %v1091, %v1290
    %v1292 = vpop.f32.mrb[0].mxu0
    %1293 = vmatprep.mubr.bf16.mxu0 0
    %1294 = vmatmul.mubr.bf16.gmra.mrb[0].mxu0 %v1069
    %v1295 = vpop.f32.mrb[0].mxu0
    %v1296 = vadd.f32 %v1091, %v1295
    %v1297 = vpop.f32.mrb[0].mxu0
    %v1298 = vpop.f32.mrb[0].mxu0
    %v1299 = vadd.f32 %v1091, %v1298
    %v1300 = vpop.f32.mrb[0].mxu0
    %1301 = vdwg.mxu0
    %v1302 = vpack.c.bf16 %v1179, %v1176
    %v1303 = vpack.c.bf16 %v1187, %v1184
    %v1304 = vpack.c.bf16 %v1195, %v1192
    %v1305 = vpack.c.bf16 %v1203, %v1200
    %v1306 = vpack.c.bf16 %v1211, %v1208
    %v1307 = vpack.c.bf16 %v1219, %v1216
    %v1308 = vpack.c.bf16 %v1227, %v1224
    %v1309 = vpack.c.bf16 %v1235, %v1232
    %v1310 = vpack.c.bf16 %v1243, %v1240
    %v1311 = vpack.c.bf16 %v1251, %v1248
    %v1312 = vpack.c.bf16 %v1259, %v1256
    %v1313 = vpack.c.bf16 %v1267, %v1264
    %v1314 = vpack.c.bf16 %v1275, %v1272
    %v1315 = vpack.c.bf16 %v1283, %v1280
    %v1316 = vpack.c.bf16 %v1291, %v1288
    %v1317 = vpack.c.bf16 %v1299, %v1296
    %v1334 = vunpack.c.l.b16 %v1302
    %v1335 = vunpack.c.h.b16 %v1302
    %v1336 = vunpack.c.l.b16 %v1303
    %v1337 = vunpack.c.h.b16 %v1303
    %v1338 = vunpack.c.l.b16 %v1304
    %v1339 = vunpack.c.h.b16 %v1304
    %v1340 = vunpack.c.l.b16 %v1305
    %v1341 = vunpack.c.h.b16 %v1305
    %v1342 = vunpack.c.l.b16 %v1306
    %v1343 = vunpack.c.h.b16 %v1306
    %v1344 = vunpack.c.l.b16 %v1307
    %v1345 = vunpack.c.h.b16 %v1307
    %v1346 = vunpack.c.l.b16 %v1308
    %v1347 = vunpack.c.h.b16 %v1308
    %v1348 = vunpack.c.l.b16 %v1309
    %v1349 = vunpack.c.h.b16 %v1309
    %v1350 = vunpack.c.l.b16 %v1310
    %v1351 = vunpack.c.h.b16 %v1310
    %v1352 = vunpack.c.l.b16 %v1311
    %v1353 = vunpack.c.h.b16 %v1311
    %v1354 = vunpack.c.l.b16 %v1312
    %v1355 = vunpack.c.h.b16 %v1312
    %v1356 = vunpack.c.l.b16 %v1313
    %v1357 = vunpack.c.h.b16 %v1313
    %v1358 = vunpack.c.l.b16 %v1314
    %v1359 = vunpack.c.h.b16 %v1314
    %v1360 = vunpack.c.l.b16 %v1315
    %v1361 = vunpack.c.h.b16 %v1315
    %v1362 = vunpack.c.l.b16 %v1316
    %v1363 = vunpack.c.h.b16 %v1316
    %v1364 = vunpack.c.l.b16 %v1317
    %v1365 = vunpack.c.h.b16 %v1317
    %v1366 = vpack.c.b16 %v1334, %v1334
    %v1367 = vpack.c.b16 %v1335, %v1335
    %v1368 = vpack.c.b16 %v1336, %v1336
    %v1369 = vpack.c.b16 %v1337, %v1337
    %v1370 = vpack.c.b16 %v1338, %v1338
    %v1371 = vpack.c.b16 %v1339, %v1339
    %v1372 = vpack.c.b16 %v1340, %v1340
    %v1373 = vpack.c.b16 %v1341, %v1341
    %v1374 = vpack.c.b16 %v1342, %v1342
    %v1375 = vpack.c.b16 %v1343, %v1343
    %v1376 = vpack.c.b16 %v1344, %v1344
    %v1377 = vpack.c.b16 %v1345, %v1345
    %v1378 = vpack.c.b16 %v1346, %v1346
    %v1379 = vpack.c.b16 %v1347, %v1347
    %v1380 = vpack.c.b16 %v1348, %v1348
    %v1381 = vpack.c.b16 %v1349, %v1349
    %v1382 = vpack.c.b16 %v1350, %v1350
    %v1383 = vpack.c.b16 %v1351, %v1351
    %v1384 = vpack.c.b16 %v1352, %v1352
    %v1385 = vpack.c.b16 %v1353, %v1353
    %v1386 = vpack.c.b16 %v1354, %v1354
    %v1387 = vpack.c.b16 %v1355, %v1355
    %v1388 = vpack.c.b16 %v1356, %v1356
    %v1389 = vpack.c.b16 %v1357, %v1357
    %v1390 = vpack.c.b16 %v1358, %v1358
    %v1391 = vpack.c.b16 %v1359, %v1359
    %v1392 = vpack.c.b16 %v1360, %v1360
    %v1393 = vpack.c.b16 %v1361, %v1361
    %v1394 = vpack.c.b16 %v1362, %v1362
    %v1395 = vpack.c.b16 %v1363, %v1363
    %v1396 = vpack.c.b16 %v1364, %v1364
    %v1397 = vpack.c.b16 %v1365, %v1365
    %1430 = vst [vmem:[#allocation11] sm:$0xf] %v1366
    %1431 = vst [vmem:[#allocation11 + $0x4] sm:$0xf] %v1367
    %1432 = vst [vmem:[#allocation11 + $0x8] sm:$0xf] %v1368
    %1433 = vst [vmem:[#allocation11 + $0xc] sm:$0xf] %v1369
    %1434 = vst [vmem:[#allocation11 + $0x10] sm:$0xf] %v1370
    %1435 = vst [vmem:[#allocation11 + $0x14] sm:$0xf] %v1371
    %1436 = vst [vmem:[#allocation11 + $0x18] sm:$0xf] %v1372
    %1437 = vst [vmem:[#allocation11 + $0x1c] sm:$0xf] %v1373
    %1438 = vst [vmem:[#allocation11 + $0x20] sm:$0xf] %v1374
    %1439 = vst [vmem:[#allocation11 + $0x24] sm:$0xf] %v1375
    %1440 = vst [vmem:[#allocation11 + $0x28] sm:$0xf] %v1376
    %1441 = vst [vmem:[#allocation11 + $0x2c] sm:$0xf] %v1377
    %1442 = vst [vmem:[#allocation11 + $0x30] sm:$0xf] %v1378
    %1443 = vst [vmem:[#allocation11 + $0x34] sm:$0xf] %v1379
    %1444 = vst [vmem:[#allocation11 + $0x38] sm:$0xf] %v1380
    %1445 = vst [vmem:[#allocation11 + $0x3c] sm:$0xf] %v1381
    %1446 = vst [vmem:[#allocation11 + $0x40] sm:$0xf] %v1382
    %1447 = vst [vmem:[#allocation11 + $0x44] sm:$0xf] %v1383
    %1448 = vst [vmem:[#allocation11 + $0x48] sm:$0xf] %v1384
    %1449 = vst [vmem:[#allocation11 + $0x4c] sm:$0xf] %v1385
    %1450 = vst [vmem:[#allocation11 + $0x50] sm:$0xf] %v1386
    %1451 = vst [vmem:[#allocation11 + $0x54] sm:$0xf] %v1387
    %1452 = vst [vmem:[#allocation11 + $0x58] sm:$0xf] %v1388
    %1453 = vst [vmem:[#allocation11 + $0x5c] sm:$0xf] %v1389
    %1454 = vst [vmem:[#allocation11 + $0x60] sm:$0xf] %v1390
    %1455 = vst [vmem:[#allocation11 + $0x64] sm:$0xf] %v1391
    %1456 = vst [vmem:[#allocation11 + $0x68] sm:$0xf] %v1392
    %1457 = vst [vmem:[#allocation11 + $0x6c] sm:$0xf] %v1393
    %1458 = vst [vmem:[#allocation11 + $0x70] sm:$0xf] %v1394
    %1459 = vst [vmem:[#allocation11 + $0x74] sm:$0xf] %v1395
    %1460 = vst [vmem:[#allocation11 + $0x78] sm:$0xf] %v1396
    %1461 = vst [vmem:[#allocation11 + $0x7c] sm:$0xf] %v1397
    // Predicated region
    $region58: #{tpu_custom_call.1} parent=1 // pred_check
      _
    $region59: #{tpu_custom_call.1} parent=1 // pred_check_branch
      %1463 = sbr.rel (0) target = $region61
    $region60: #{tpu_custom_call.1} parent=1 // pred_region
      %s1465 = ssub.s32 2048, 2048
      %1466 = vsyncadd [#allocation4], %s1465
      %s1467 = sshll.u32 [#allocation11], 4
      %s1468 = int_to_ptr.vmem [resolvable:$true] %s1467
      %1473 = dma.vmem_to_hbm [thread:$0]  %s1468, 2048, %s9, [#allocation4], 64, 64, 4
    $region61: #{tpu_custom_call.1} parent=1 // pred_fallthru
      _
    // Predicated region
    $region62: #{tpu_custom_call.1} parent=1 // pred_check
      _
    $region63: #{tpu_custom_call.1} parent=1 // pred_check_branch
      %1475 = sbr.rel (0) target = $region65
    $region64: #{tpu_custom_call.1} parent=1 // pred_region
      %1476 = dma.done [#allocation4], 2048
    $region65: #{tpu_custom_call.1} parent=1 // pred_fallthru
      _
    %1477 = vsyncpa [#allocation3], 1
    %1478 = vsyncpa [#allocation6], 1
    %1479 = vsyncpa [#allocation9], 1
    %1480 = vsyncpa [#allocation4], 1

// kernel: tpu_custom_call.1
$region0: #{tpu_custom_call.1}
  #allocation0 [shape = 'u32[]', space=smem, size = 0x4, offset = 0x4, fixed_abs, tag = 'smem constant byte address 0x4 - core index']
  #allocation1 [shape = 'u32[144,128]{1,0:T(1,128)}', space=vmem, size = 0x12000, scoped, tag = 'internal scratch']
  %s0 = inlined_call_operand.hbm [shape: bf16[256,128], index: 0, kind: input, shape index: {}]
  %s1 = inlined_call_operand.hbm [shape: bf16[128,128], index: 1, kind: input, shape index: {}]
  %s2 = inlined_call_operand.vmem [shape: f32[1,128], index: 2, kind: input, shape index: {}]
  %s3 = inlined_call_operand.hbm [shape: bf16[128,128], index: 3, kind: input, shape index: {}]
  %s4 = inlined_call_operand.vmem [shape: f32[1,128], index: 4, kind: input, shape index: {}]
  %s5 = inlined_call_operand.hbm [shape: bf16[128,128], index: 5, kind: input, shape index: {}]
  %s6 = inlined_call_operand.vmem [shape: f32[1,128], index: 6, kind: input, shape index: {}]
  %s7 = inlined_call_operand.hbm [shape: bf16[128,128], index: 7, kind: input, shape index: {}]
  %s8 = inlined_call_operand.vmem [shape: f32[1,128], index: 8, kind: input, shape index: {}]
  %s9 = inlined_call_operand.hbm [shape: bf16[256,128], index: 9, kind: output, shape index: {}]
  %s10 = sld [smem:[#allocation0]]
  $region66: #{tpu_custom_call.1} parent=0
    _
  %s12 = ssub.s32 1, %s10
  %s13 = scalar_select 0, %s12, %s10
  $region1: #{tpu_custom_call.1} parent=0
    #allocation2 [shape = 'u8[65536]{0}', space=vmem, size = 0x10000, scoped, tag = 'input window, operand 0, single buffered']
    #allocation3 [shape = 's32[1]{0}', space=sflag, size = 0x4, scoped, tag = 'scoped memory for tpu_custom_call.1']
    #allocation4 [shape = 's32[1]{0}', space=sflag, size = 0x4, scoped, tag = 'scoped memory for tpu_custom_call.1']
    #allocation5 [shape = 'u8[32768]{0}', space=vmem, size = 0x8000, scoped, tag = 'input window, operand 1, single buffered']
    #allocation6 [shape = 's32[1]{0}', space=sflag, size = 0x4, scoped, tag = 'scoped memory for tpu_custom_call.1']
    #allocation7 [shape = 'u8[32768]{0}', space=vmem, size = 0x8000, scoped, tag = 'input window, operand 3, single buffered']
    #allocation8 [shape = 'u8[32768]{0}', space=vmem, size = 0x8000, scoped, tag = 'input window, operand 5, single buffered']
    #allocation9 [shape = 's32[1]{0}', space=sflag, size = 0x4, scoped, tag = 'scoped memory for tpu_custom_call.1']
    #allocation10 [shape = 'u8[32768]{0}', space=vmem, size = 0x8000, scoped, tag = 'input window, operand 7, single buffered']
    #allocation11 [shape = 'u8[65536]{0}', space=vmem, size = 0x10000, scoped, tag = 'output window, operand 0, single buffered']
    %14 = vsyncpa [#allocation3], 0
    %15 = vsyncpa [#allocation6], 0
    %16 = vsyncpa [#allocation9], 0
    %17 = vsyncpa [#allocation4], 0
    // Predicated region
    $region2: #{tpu_custom_call.1} parent=1 // pred_check
      _
    $region3: #{tpu_custom_call.1} parent=1 // pred_check_branch
      %19 = sbr.rel (0) target = $region5
    $region4: #{tpu_custom_call.1} parent=1 // pred_region
      %s21 = ssub.s32 2048, 2048
      %22 = vsyncadd [#allocation3], %s21
      %s23 = sshll.u32 [#allocation2], 4
      %s24 = int_to_ptr.vmem [resolvable:$true] %s23
      %29 = dma.hbm_to_vmem [thread:$0]  %s0, 2048, %s24, [#allocation3], 64, 64, 4
    $region5: #{tpu_custom_call.1} parent=1 // pred_fallthru
      _
    // Predicated region
    $region6: #{tpu_custom_call.1} parent=1 // pred_check
      _
    $region7: #{tpu_custom_call.1} parent=1 // pred_check_branch
      %31 = sbr.rel (0) target = $region9
    $region8: #{tpu_custom_call.1} parent=1 // pred_region
      %s33 = ssub.s32 1024, 1024
      %34 = vsyncadd [#allocation6], %s33
      %s35 = sshll.u32 [#allocation5], 4
      %s36 = int_to_ptr.vmem [resolvable:$true] %s35
      %41 = dma.hbm_to_vmem [thread:$0]  %s1, 1024, %s36, [#allocation6], 64, 64, 4
    $region9: #{tpu_custom_call.1} parent=1 // pred_fallthru
      _
    // Predicated region
    $region10: #{tpu_custom_call.1} parent=1 // pred_check
      _
    $region11: #{tpu_custom_call.1} parent=1 // pred_check_branch
      %43 = sbr.rel (0) target = $region13
    $region12: #{tpu_custom_call.1} parent=1 // pred_region
      _
    $region13: #{tpu_custom_call.1} parent=1 // pred_fallthru
      _
    // Predicated region
    $region14: #{tpu_custom_call.1} parent=1 // pred_check
      _
    $region15: #{tpu_custom_call.1} parent=1 // pred_check_branch
      %45 = sbr.rel (0) target = $region17
    $region16: #{tpu_custom_call.1} parent=1 // pred_region
      %s47 = ssub.s32 1024, 1024
      %48 = vsyncadd [#allocation6], %s47
      %s49 = sshll.u32 [#allocation7], 4
      %s50 = int_to_ptr.vmem [resolvable:$true] %s49
      %55 = dma.hbm_to_vmem [thread:$0]  %s3, 1024, %s50, [#allocation6], 64, 64, 4
    $region17: #{tpu_custom_call.1} parent=1 // pred_fallthru
      _
    // Predicated region
    $region18: #{tpu_custom_call.1} parent=1 // pred_check
      _
    $region19: #{tpu_custom_call.1} parent=1 // pred_check_branch
      %57 = sbr.rel (0) target = $region21
    $region20: #{tpu_custom_call.1} parent=1 // pred_region
      _
    $region21: #{tpu_custom_call.1} parent=1 // pred_fallthru
      _
    // Predicated region
    $region22: #{tpu_custom_call.1} parent=1 // pred_check
      _
    $region23: #{tpu_custom_call.1} parent=1 // pred_check_branch
      %59 = sbr.rel (0) target = $region25
    $region24: #{tpu_custom_call.1} parent=1 // pred_region
      %s61 = ssub.s32 1024, 1024
      %62 = vsyncadd [#allocation9], %s61
      %s63 = sshll.u32 [#allocation8], 4
      %s64 = int_to_ptr.vmem [resolvable:$true] %s63
      %69 = dma.hbm_to_vmem [thread:$0]  %s5, 1024, %s64, [#allocation9], 64, 64, 4
    $region25: #{tpu_custom_call.1} parent=1 // pred_fallthru
      _
    // Predicated region
    $region26: #{tpu_custom_call.1} parent=1 // pred_check
      _
    $region27: #{tpu_custom_call.1} parent=1 // pred_check_branch
      %71 = sbr.rel (0) target = $region29
    $region28: #{tpu_custom_call.1} parent=1 // pred_region
      _
    $region29: #{tpu_custom_call.1} parent=1 // pred_fallthru
      _
    // Predicated region
    $region30: #{tpu_custom_call.1} parent=1 // pred_check
      _
    $region31: #{tpu_custom_call.1} parent=1 // pred_check_branch
      %73 = sbr.rel (0) target = $region33
    $region32: #{tpu_custom_call.1} parent=1 // pred_region
      %s75 = ssub.s32 1024, 1024
      %76 = vsyncadd [#allocation9], %s75
      %s77 = sshll.u32 [#allocation10], 4
      %s78 = int_to_ptr.vmem [resolvable:$true] %s77
      %83 = dma.hbm_to_vmem [thread:$0]  %s7, 1024, %s78, [#allocation9], 64, 64, 4
    $region33: #{tpu_custom_call.1} parent=1 // pred_fallthru
      _
    // Predicated region
    $region34: #{tpu_custom_call.1} parent=1 // pred_check
      _
    $region35: #{tpu_custom_call.1} parent=1 // pred_check_branch
      %85 = sbr.rel (0) target = $region37
    $region36: #{tpu_custom_call.1} parent=1 // pred_region
      _
    $region37: #{tpu_custom_call.1} parent=1 // pred_fallthru
      _
    // Predicated region
    $region38: #{tpu_custom_call.1} parent=1 // pred_check
      _
    $region39: #{tpu_custom_call.1} parent=1 // pred_check_branch
      %87 = sbr.rel (0) target = $region41
    $region40: #{tpu_custom_call.1} parent=1 // pred_region
      %88 = dma.done [#allocation3], 2048
    $region41: #{tpu_custom_call.1} parent=1 // pred_fallthru
      _
    // Predicated region
    $region42: #{tpu_custom_call.1} parent=1 // pred_check
      _
    $region43: #{tpu_custom_call.1} parent=1 // pred_check_branch
      %90 = sbr.rel (0) target = $region45
    $region44: #{tpu_custom_call.1} parent=1 // pred_region
      %91 = dma.done [#allocation6], 1024
    $region45: #{tpu_custom_call.1} parent=1 // pred_fallthru
      _
    // Predicated region
    $region46: #{tpu_custom_call.1} parent=1 // pred_check
      _
    $region47: #{tpu_custom_call.1} parent=1 // pred_check_branch
      %93 = sbr.rel (0) target = $region49
    $region48: #{tpu_custom_call.1} parent=1 // pred_region
      %94 = dma.done [#allocation6], 1024
    $region49: #{tpu_custom_call.1} parent=1 // pred_fallthru
      _
    // Predicated region
    $region50: #{tpu_custom_call.1} parent=1 // pred_check
      _
    $region51: #{tpu_custom_call.1} parent=1 // pred_check_branch
      %96 = sbr.rel (0) target = $region53
    $region52: #{tpu_custom_call.1} parent=1 // pred_region
      %97 = dma.done [#allocation9], 1024
    $region53: #{tpu_custom_call.1} parent=1 // pred_fallthru
      _
    // Predicated region
    $region54: #{tpu_custom_call.1} parent=1 // pred_check
      _
    $region55: #{tpu_custom_call.1} parent=1 // pred_check_branch
      %99 = sbr.rel (0) target = $region57
    $region56: #{tpu_custom_call.1} parent=1 // pred_region
      %100 = dma.done [#allocation9], 1024
    $region57: #{tpu_custom_call.1} parent=1 // pred_fallthru
      _
    %v102 = vld [vmem:[#allocation2] sm:$0xf]
    %v103 = vld [vmem:[#allocation2 + $0x4] sm:$0xf]
    %v104 = vld [vmem:[#allocation2 + $0x8] sm:$0xf]
    %v105 = vld [vmem:[#allocation2 + $0xc] sm:$0xf]
    %v106 = vld [vmem:[#allocation2 + $0x10] sm:$0xf]
    %v107 = vld [vmem:[#allocation2 + $0x14] sm:$0xf]
    %v108 = vld [vmem:[#allocation2 + $0x18] sm:$0xf]
    %v109 = vld [vmem:[#allocation2 + $0x1c] sm:$0xf]
    %v110 = vld [vmem:[#allocation2 + $0x20] sm:$0xf]
    %v111 = vld [vmem:[#allocation2 + $0x24] sm:$0xf]
    %v112 = vld [vmem:[#allocation2 + $0x28] sm:$0xf]
    %v113 = vld [vmem:[#allocation2 + $0x2c] sm:$0xf]
    %v114 = vld [vmem:[#allocation2 + $0x30] sm:$0xf]
    %v115 = vld [vmem:[#allocation2 + $0x34] sm:$0xf]
    %v116 = vld [vmem:[#allocation2 + $0x38] sm:$0xf]
    %v117 = vld [vmem:[#allocation2 + $0x3c] sm:$0xf]
    %v118 = vld [vmem:[#allocation2 + $0x40] sm:$0xf]
    %v119 = vld [vmem:[#allocation2 + $0x44] sm:$0xf]
    %v120 = vld [vmem:[#allocation2 + $0x48] sm:$0xf]
    %v121 = vld [vmem:[#allocation2 + $0x4c] sm:$0xf]
    %v122 = vld [vmem:[#allocation2 + $0x50] sm:$0xf]
    %v123 = vld [vmem:[#allocation2 + $0x54] sm:$0xf]
    %v124 = vld [vmem:[#allocation2 + $0x58] sm:$0xf]
    %v125 = vld [vmem:[#allocation2 + $0x5c] sm:$0xf]
    %v126 = vld [vmem:[#allocation2 + $0x60] sm:$0xf]
    %v127 = vld [vmem:[#allocation2 + $0x64] sm:$0xf]
    %v128 = vld [vmem:[#allocation2 + $0x68] sm:$0xf]
    %v129 = vld [vmem:[#allocation2 + $0x6c] sm:$0xf]
    %v130 = vld [vmem:[#allocation2 + $0x70] sm:$0xf]
    %v131 = vld [vmem:[#allocation2 + $0x74] sm:$0xf]
    %v132 = vld [vmem:[#allocation2 + $0x78] sm:$0xf]
    %v133 = vld [vmem:[#allocation2 + $0x7c] sm:$0xf]
    %v134 = vld [vmem:[#allocation5] sm:$0xf]
    %v135 = vld [vmem:[#allocation5 + $0x4] sm:$0xf]
    %v136 = vld [vmem:[#allocation5 + $0x8] sm:$0xf]
    %v137 = vld [vmem:[#allocation5 + $0xc] sm:$0xf]
    %v138 = vld [vmem:[#allocation5 + $0x10] sm:$0xf]
    %v139 = vld [vmem:[#allocation5 + $0x14] sm:$0xf]
    %v140 = vld [vmem:[#allocation5 + $0x18] sm:$0xf]
    %v141 = vld [vmem:[#allocation5 + $0x1c] sm:$0xf]
    %v142 = vld [vmem:[#allocation5 + $0x20] sm:$0xf]
    %v143 = vld [vmem:[#allocation5 + $0x24] sm:$0xf]
    %v144 = vld [vmem:[#allocation5 + $0x28] sm:$0xf]
    %v145 = vld [vmem:[#allocation5 + $0x2c] sm:$0xf]
    %v146 = vld [vmem:[#allocation5 + $0x30] sm:$0xf]
    %v147 = vld [vmem:[#allocation5 + $0x34] sm:$0xf]
    %v148 = vld [vmem:[#allocation5 + $0x38] sm:$0xf]
    %v149 = vld [vmem:[#allocation5 + $0x3c] sm:$0xf]
    %v150 = vld [vmem:[%s2] sm:$0x1]
    %v152 = vlaneseq
    %v153 = vshrl.u32 %v152, 7
    %v154 = vsub.s32 0, %v153
    %v155 = vrot.slane %v150, %v154
    %v189 = vunpack.c.l.b16 %v102
    %v190 = vunpack.c.l.b16 %v103
    %v191 = vunpack.c.l.b16 %v104
    %v192 = vunpack.c.l.b16 %v105
    %v193 = vunpack.c.l.b16 %v106
    %v194 = vunpack.c.l.b16 %v107
    %v195 = vunpack.c.l.b16 %v108
    %v196 = vunpack.c.l.b16 %v109
    %v197 = vunpack.c.l.b16 %v110
    %v198 = vunpack.c.l.b16 %v111
    %v199 = vunpack.c.l.b16 %v112
    %v200 = vunpack.c.l.b16 %v113
    %v201 = vunpack.c.l.b16 %v114
    %v202 = vunpack.c.l.b16 %v115
    %v203 = vunpack.c.l.b16 %v116
    %v204 = vunpack.c.l.b16 %v117
    %v205 = vunpack.c.l.b16 %v118
    %v206 = vunpack.c.l.b16 %v119
    %v207 = vunpack.c.l.b16 %v120
    %v208 = vunpack.c.l.b16 %v121
    %v209 = vunpack.c.l.b16 %v122
    %v210 = vunpack.c.l.b16 %v123
    %v211 = vunpack.c.l.b16 %v124
    %v212 = vunpack.c.l.b16 %v125
    %v213 = vunpack.c.l.b16 %v126
    %v214 = vunpack.c.l.b16 %v127
    %v215 = vunpack.c.l.b16 %v128
    %v216 = vunpack.c.l.b16 %v129
    %v217 = vunpack.c.l.b16 %v130
    %v218 = vunpack.c.l.b16 %v131
    %v219 = vunpack.c.l.b16 %v132
    %v220 = vunpack.c.l.b16 %v133
    %v221 = vpack.c.b16 %v190, %v189
    %v222 = vpack.c.b16 %v192, %v191
    %v223 = vpack.c.b16 %v194, %v193
    %v224 = vpack.c.b16 %v196, %v195
    %v225 = vpack.c.b16 %v198, %v197
    %v226 = vpack.c.b16 %v200, %v199
    %v227 = vpack.c.b16 %v202, %v201
    %v228 = vpack.c.b16 %v204, %v203
    %v229 = vpack.c.b16 %v206, %v205
    %v230 = vpack.c.b16 %v208, %v207
    %v231 = vpack.c.b16 %v210, %v209
    %v232 = vpack.c.b16 %v212, %v211
    %v233 = vpack.c.b16 %v214, %v213
    %v234 = vpack.c.b16 %v216, %v215
    %v235 = vpack.c.b16 %v218, %v217
    %v236 = vpack.c.b16 %v220, %v219
    %v269 = vunpack.c.l.b16 %v134
    %v270 = vunpack.c.l.b16 %v135
    %v271 = vunpack.c.l.b16 %v136
    %v272 = vunpack.c.l.b16 %v137
    %v273 = vunpack.c.l.b16 %v138
    %v274 = vunpack.c.l.b16 %v139
    %v275 = vunpack.c.l.b16 %v140
    %v276 = vunpack.c.l.b16 %v141
    %v277 = vunpack.c.l.b16 %v142
    %v278 = vunpack.c.l.b16 %v143
    %v279 = vunpack.c.l.b16 %v144
    %v280 = vunpack.c.l.b16 %v145
    %v281 = vunpack.c.l.b16 %v146
    %v282 = vunpack.c.l.b16 %v147
    %v283 = vunpack.c.l.b16 %v148
    %v284 = vunpack.c.l.b16 %v149
    %v285 = vpack.c.b16 %v270, %v269
    %v286 = vpack.c.b16 %v272, %v271
    %v287 = vpack.c.b16 %v274, %v273
    %v288 = vpack.c.b16 %v276, %v275
    %v289 = vpack.c.b16 %v278, %v277
    %v290 = vpack.c.b16 %v280, %v279
    %v291 = vpack.c.b16 %v282, %v281
    %v292 = vpack.c.b16 %v284, %v283
    %301 = vmatprep.subr.bf16.mxu0 0
    %302 = vmatpush1.bf16.msra.mxu0 %v285
    %303 = vmatprep.subr.bf16.mxu0 0
    %304 = vmatpush1.bf16.msra.mxu0 %v286
    %305 = vmatprep.subr.bf16.mxu0 0
    %306 = vmatpush1.bf16.msra.mxu0 %v287
    %307 = vmatprep.subr.bf16.mxu0 0
    %308 = vmatpush1.bf16.msra.mxu0 %v288
    %309 = vmatprep.subr.bf16.mxu0 0
    %310 = vmatpush1.bf16.msra.mxu0 %v289
    %311 = vmatprep.subr.bf16.mxu0 0
    %312 = vmatpush1.bf16.msra.mxu0 %v290
    %313 = vmatprep.subr.bf16.mxu0 0
    %314 = vmatpush1.bf16.msra.mxu0 %v291
    %315 = vmatprep.subr.bf16.mxu0 0
    %316 = vmatpush1.bf16.msra.mxu0 %v292
    %317 = vmatprep.subr.bf16.mxu0 0
    %318 = vmatpush1.bf16.msra.mxu0 0
    %319 = vmatprep.subr.bf16.mxu0 0
    %320 = vmatpush1.bf16.msra.mxu0 0
    %321 = vmatprep.subr.bf16.mxu0 0
    %322 = vmatpush1.bf16.msra.mxu0 0
    %323 = vmatprep.subr.bf16.mxu0 0
    %324 = vmatpush1.bf16.msra.mxu0 0
    %325 = vmatprep.subr.bf16.mxu0 0
    %326 = vmatpush1.bf16.msra.mxu0 0
    %327 = vmatprep.subr.bf16.mxu0 0
    %328 = vmatpush1.bf16.msra.mxu0 0
    %329 = vmatprep.subr.bf16.mxu0 0
    %330 = vmatpush1.bf16.msra.mxu0 0
    %331 = vmatprep.subr.bf16.mxu0 0
    %332 = vmatpush1.bf16.msra.mxu0 0
    %333 = vmatprep.mubr.bf16.mxu0 0
    %334 = vmatmul.mubr.bf16.gmra.mrb[0].mxu0 %v221
    %v335 = vpop.f32.mrb[0].mxu0
    %v336 = vadd.f32 %v155, %v335
    %v337 = vpop.f32.mrb[0].mxu0
    %v338 = vpop.f32.mrb[0].mxu0
    %v339 = vadd.f32 %v155, %v338
    %v340 = vpop.f32.mrb[0].mxu0
    %341 = vmatprep.mubr.bf16.mxu0 0
    %342 = vmatmul.mubr.bf16.gmra.mrb[0].mxu0 %v222
    %v343 = vpop.f32.mrb[0].mxu0
    %v344 = vadd.f32 %v155, %v343
    %v345 = vpop.f32.mrb[0].mxu0
    %v346 = vpop.f32.mrb[0].mxu0
    %v347 = vadd.f32 %v155, %v346
    %v348 = vpop.f32.mrb[0].mxu0
    %349 = vmatprep.mubr.bf16.mxu0 0
    %350 = vmatmul.mubr.bf16.gmra.mrb[0].mxu0 %v223
    %v351 = vpop.f32.mrb[0].mxu0
    %v352 = vadd.f32 %v155, %v351
    %v353 = vpop.f32.mrb[0].mxu0
    %v354 = vpop.f32.mrb[0].mxu0
    %v355 = vadd.f32 %v155, %v354
    %v356 = vpop.f32.mrb[0].mxu0
    %357 = vmatprep.mubr.bf16.mxu0 0
    %358 = vmatmul.mubr.bf16.gmra.mrb[0].mxu0 %v224
    %v359 = vpop.f32.mrb[0].mxu0
    %v360 = vadd.f32 %v155, %v359
    %v361 = vpop.f32.mrb[0].mxu0
    %v362 = vpop.f32.mrb[0].mxu0
    %v363 = vadd.f32 %v155, %v362
    %v364 = vpop.f32.mrb[0].mxu0
    %365 = vmatprep.mubr.bf16.mxu0 0
    %366 = vmatmul.mubr.bf16.gmra.mrb[0].mxu0 %v225
    %v367 = vpop.f32.mrb[0].mxu0
    %v368 = vadd.f32 %v155, %v367
    %v369 = vpop.f32.mrb[0].mxu0
    %v370 = vpop.f32.mrb[0].mxu0
    %v371 = vadd.f32 %v155, %v370
    %v372 = vpop.f32.mrb[0].mxu0
    %373 = vmatprep.mubr.bf16.mxu0 0
    %374 = vmatmul.mubr.bf16.gmra.mrb[0].mxu0 %v226
    %v375 = vpop.f32.mrb[0].mxu0
    %v376 = vadd.f32 %v155, %v375
    %v377 = vpop.f32.mrb[0].mxu0
    %v378 = vpop.f32.mrb[0].mxu0
    %v379 = vadd.f32 %v155, %v378
    %v380 = vpop.f32.mrb[0].mxu0
    %381 = vmatprep.mubr.bf16.mxu0 0
    %382 = vmatmul.mubr.bf16.gmra.mrb[0].mxu0 %v227
    %v383 = vpop.f32.mrb[0].mxu0
    %v384 = vadd.f32 %v155, %v383
    %v385 = vpop.f32.mrb[0].mxu0
    %v386 = vpop.f32.mrb[0].mxu0
    %v387 = vadd.f32 %v155, %v386
    %v388 = vpop.f32.mrb[0].mxu0
    %389 = vmatprep.mubr.bf16.mxu0 0
    %390 = vmatmul.mubr.bf16.gmra.mrb[0].mxu0 %v228
    %v391 = vpop.f32.mrb[0].mxu0
    %v392 = vadd.f32 %v155, %v391
    %v393 = vpop.f32.mrb[0].mxu0
    %v394 = vpop.f32.mrb[0].mxu0
    %v395 = vadd.f32 %v155, %v394
    %v396 = vpop.f32.mrb[0].mxu0
    %397 = vmatprep.mubr.bf16.mxu0 0
    %398 = vmatmul.mubr.bf16.gmra.mrb[0].mxu0 %v229
    %v399 = vpop.f32.mrb[0].mxu0
    %v400 = vadd.f32 %v155, %v399
    %v401 = vpop.f32.mrb[0].mxu0
    %v402 = vpop.f32.mrb[0].mxu0
    %v403 = vadd.f32 %v155, %v402
    %v404 = vpop.f32.mrb[0].mxu0
    %405 = vmatprep.mubr.bf16.mxu0 0
    %406 = vmatmul.mubr.bf16.gmra.mrb[0].mxu0 %v230
    %v407 = vpop.f32.mrb[0].mxu0
    %v408 = vadd.f32 %v155, %v407
    %v409 = vpop.f32.mrb[0].mxu0
    %v410 = vpop.f32.mrb[0].mxu0
    %v411 = vadd.f32 %v155, %v410
    %v412 = vpop.f32.mrb[0].mxu0
    %413 = vmatprep.mubr.bf16.mxu0 0
    %414 = vmatmul.mubr.bf16.gmra.mrb[0].mxu0 %v231
    %v415 = vpop.f32.mrb[0].mxu0
    %v416 = vadd.f32 %v155, %v415
    %v417 = vpop.f32.mrb[0].mxu0
    %v418 = vpop.f32.mrb[0].mxu0
    %v419 = vadd.f32 %v155, %v418
    %v420 = vpop.f32.mrb[0].mxu0
    %421 = vmatprep.mubr.bf16.mxu0 0
    %422 = vmatmul.mubr.bf16.gmra.mrb[0].mxu0 %v232
    %v423 = vpop.f32.mrb[0].mxu0
    %v424 = vadd.f32 %v155, %v423
    %v425 = vpop.f32.mrb[0].mxu0
    %v426 = vpop.f32.mrb[0].mxu0
    %v427 = vadd.f32 %v155, %v426
    %v428 = vpop.f32.mrb[0].mxu0
    %429 = vmatprep.mubr.bf16.mxu0 0
    %430 = vmatmul.mubr.bf16.gmra.mrb[0].mxu0 %v233
    %v431 = vpop.f32.mrb[0].mxu0
    %v432 = vadd.f32 %v155, %v431
    %v433 = vpop.f32.mrb[0].mxu0
    %v434 = vpop.f32.mrb[0].mxu0
    %v435 = vadd.f32 %v155, %v434
    %v436 = vpop.f32.mrb[0].mxu0
    %437 = vmatprep.mubr.bf16.mxu0 0
    %438 = vmatmul.mubr.bf16.gmra.mrb[0].mxu0 %v234
    %v439 = vpop.f32.mrb[0].mxu0
    %v440 = vadd.f32 %v155, %v439
    %v441 = vpop.f32.mrb[0].mxu0
    %v442 = vpop.f32.mrb[0].mxu0
    %v443 = vadd.f32 %v155, %v442
    %v444 = vpop.f32.mrb[0].mxu0
    %445 = vmatprep.mubr.bf16.mxu0 0
    %446 = vmatmul.mubr.bf16.gmra.mrb[0].mxu0 %v235
    %v447 = vpop.f32.mrb[0].mxu0
    %v448 = vadd.f32 %v155, %v447
    %v449 = vpop.f32.mrb[0].mxu0
    %v450 = vpop.f32.mrb[0].mxu0
    %v451 = vadd.f32 %v155, %v450
    %v452 = vpop.f32.mrb[0].mxu0
    %453 = vmatprep.mubr.bf16.mxu0 0
    %454 = vmatmul.mubr.bf16.gmra.mrb[0].mxu0 %v236
    %v455 = vpop.f32.mrb[0].mxu0
    %v456 = vadd.f32 %v155, %v455
    %v457 = vpop.f32.mrb[0].mxu0
    %v458 = vpop.f32.mrb[0].mxu0
    %v459 = vadd.f32 %v155, %v458
    %v460 = vpop.f32.mrb[0].mxu0
    %461 = vdwg.mxu0
    %v462 = vmax.f32 %v336, 0.0
    %v463 = vmax.f32 %v339, 0.0
    %v464 = vmax.f32 %v344, 0.0
    %v465 = vmax.f32 %v347, 0.0
    %v466 = vmax.f32 %v352, 0.0
    %v467 = vmax.f32 %v355, 0.0
    %v468 = vmax.f32 %v360, 0.0
    %v469 = vmax.f32 %v363, 0.0
    %v470 = vmax.f32 %v368, 0.0
    %v471 = vmax.f32 %v371, 0.0
    %v472 = vmax.f32 %v376, 0.0
    %v473 = vmax.f32 %v379, 0.0
    %v474 = vmax.f32 %v384, 0.0
    %v475 = vmax.f32 %v387, 0.0
    %v476 = vmax.f32 %v392, 0.0
    %v477 = vmax.f32 %v395, 0.0
    %v478 = vmax.f32 %v400, 0.0
    %v479 = vmax.f32 %v403, 0.0
    %v480 = vmax.f32 %v408, 0.0
    %v481 = vmax.f32 %v411, 0.0
    %v482 = vmax.f32 %v416, 0.0
    %v483 = vmax.f32 %v419, 0.0
    %v484 = vmax.f32 %v424, 0.0
    %v485 = vmax.f32 %v427, 0.0
    %v486 = vmax.f32 %v432, 0.0
    %v487 = vmax.f32 %v435, 0.0
    %v488 = vmax.f32 %v440, 0.0
    %v489 = vmax.f32 %v443, 0.0
    %v490 = vmax.f32 %v448, 0.0
    %v491 = vmax.f32 %v451, 0.0
    %v492 = vmax.f32 %v456, 0.0
    %v493 = vmax.f32 %v459, 0.0
    %v494 = vpack.c.bf16 %v463, %v462
    %v495 = vpack.c.bf16 %v465, %v464
    %v496 = vpack.c.bf16 %v467, %v466
    %v497 = vpack.c.bf16 %v469, %v468
    %v498 = vpack.c.bf16 %v471, %v470
    %v499 = vpack.c.bf16 %v473, %v472
    %v500 = vpack.c.bf16 %v475, %v474
    %v501 = vpack.c.bf16 %v477, %v476
    %v502 = vpack.c.bf16 %v479, %v478
    %v503 = vpack.c.bf16 %v481, %v480
    %v504 = vpack.c.bf16 %v483, %v482
    %v505 = vpack.c.bf16 %v485, %v484
    %v506 = vpack.c.bf16 %v487, %v486
    %v507 = vpack.c.bf16 %v489, %v488
    %v508 = vpack.c.bf16 %v491, %v490
    %v509 = vpack.c.bf16 %v493, %v492
    %v510 = vld [vmem:[#allocation7] sm:$0xf]
    %v511 = vld [vmem:[#allocation7 + $0x4] sm:$0xf]
    %v512 = vld [vmem:[#allocation7 + $0x8] sm:$0xf]
    %v513 = vld [vmem:[#allocation7 + $0xc] sm:$0xf]
    %v514 = vld [vmem:[#allocation7 + $0x10] sm:$0xf]
    %v515 = vld [vmem:[#allocation7 + $0x14] sm:$0xf]
    %v516 = vld [vmem:[#allocation7 + $0x18] sm:$0xf]
    %v517 = vld [vmem:[#allocation7 + $0x1c] sm:$0xf]
    %v518 = vld [vmem:[#allocation7 + $0x20] sm:$0xf]
    %v519 = vld [vmem:[#allocation7 + $0x24] sm:$0xf]
    %v520 = vld [vmem:[#allocation7 + $0x28] sm:$0xf]
    %v521 = vld [vmem:[#allocation7 + $0x2c] sm:$0xf]
    %v522 = vld [vmem:[#allocation7 + $0x30] sm:$0xf]
    %v523 = vld [vmem:[#allocation7 + $0x34] sm:$0xf]
    %v524 = vld [vmem:[#allocation7 + $0x38] sm:$0xf]
    %v525 = vld [vmem:[#allocation7 + $0x3c] sm:$0xf]
    %v526 = vld [vmem:[%s4] sm:$0x1]
    %v528 = vlaneseq
    %v529 = vshrl.u32 %v528, 7
    %v530 = vsub.s32 0, %v529
    %v531 = vrot.slane %v526, %v530
    %v549 = vunpack.c.l.b16 %v510
    %v550 = vunpack.c.l.b16 %v511
    %v551 = vunpack.c.l.b16 %v512
    %v552 = vunpack.c.l.b16 %v513
    %v553 = vunpack.c.l.b16 %v514
    %v554 = vunpack.c.l.b16 %v515
    %v555 = vunpack.c.l.b16 %v516
    %v556 = vunpack.c.l.b16 %v517
    %v557 = vunpack.c.l.b16 %v518
    %v558 = vunpack.c.l.b16 %v519
    %v559 = vunpack.c.l.b16 %v520
    %v560 = vunpack.c.l.b16 %v521
    %v561 = vunpack.c.l.b16 %v522
    %v562 = vunpack.c.l.b16 %v523
    %v563 = vunpack.c.l.b16 %v524
    %v564 = vunpack.c.l.b16 %v525
    %v565 = vpack.c.b16 %v550, %v549
    %v566 = vpack.c.b16 %v552, %v551
    %v567 = vpack.c.b16 %v554, %v553
    %v568 = vpack.c.b16 %v556, %v555
    %v569 = vpack.c.b16 %v558, %v557
    %v570 = vpack.c.b16 %v560, %v559
    %v571 = vpack.c.b16 %v562, %v561
    %v572 = vpack.c.b16 %v564, %v563
    %581 = vmatprep.subr.bf16.mxu0 0
    %582 = vmatpush1.bf16.msra.mxu0 %v565
    %583 = vmatprep.subr.bf16.mxu0 0
    %584 = vmatpush1.bf16.msra.mxu0 %v566
    %585 = vmatprep.subr.bf16.mxu0 0
    %586 = vmatpush1.bf16.msra.mxu0 %v567
    %587 = vmatprep.subr.bf16.mxu0 0
    %588 = vmatpush1.bf16.msra.mxu0 %v568
    %589 = vmatprep.subr.bf16.mxu0 0
    %590 = vmatpush1.bf16.msra.mxu0 %v569
    %591 = vmatprep.subr.bf16.mxu0 0
    %592 = vmatpush1.bf16.msra.mxu0 %v570
    %593 = vmatprep.subr.bf16.mxu0 0
    %594 = vmatpush1.bf16.msra.mxu0 %v571
    %595 = vmatprep.subr.bf16.mxu0 0
    %596 = vmatpush1.bf16.msra.mxu0 %v572
    %597 = vmatprep.subr.bf16.mxu0 0
    %598 = vmatpush1.bf16.msra.mxu0 0
    %599 = vmatprep.subr.bf16.mxu0 0
    %600 = vmatpush1.bf16.msra.mxu0 0
    %601 = vmatprep.subr.bf16.mxu0 0
    %602 = vmatpush1.bf16.msra.mxu0 0
    %603 = vmatprep.subr.bf16.mxu0 0
    %604 = vmatpush1.bf16.msra.mxu0 0
    %605 = vmatprep.subr.bf16.mxu0 0
    %606 = vmatpush1.bf16.msra.mxu0 0
    %607 = vmatprep.subr.bf16.mxu0 0
    %608 = vmatpush1.bf16.msra.mxu0 0
    %609 = vmatprep.subr.bf16.mxu0 0
    %610 = vmatpush1.bf16.msra.mxu0 0
    %611 = vmatprep.subr.bf16.mxu0 0
    %612 = vmatpush1.bf16.msra.mxu0 0
    %613 = vmatprep.mubr.bf16.mxu0 0
    %614 = vmatmul.mubr.bf16.gmra.mrb[0].mxu0 %v494
    %v615 = vpop.f32.mrb[0].mxu0
    %v616 = vadd.f32 %v531, %v615
    %v617 = vpop.f32.mrb[0].mxu0
    %v618 = vpop.f32.mrb[0].mxu0
    %v619 = vadd.f32 %v531, %v618
    %v620 = vpop.f32.mrb[0].mxu0
    %621 = vmatprep.mubr.bf16.mxu0 0
    %622 = vmatmul.mubr.bf16.gmra.mrb[0].mxu0 %v495
    %v623 = vpop.f32.mrb[0].mxu0
    %v624 = vadd.f32 %v531, %v623
    %v625 = vpop.f32.mrb[0].mxu0
    %v626 = vpop.f32.mrb[0].mxu0
    %v627 = vadd.f32 %v531, %v626
    %v628 = vpop.f32.mrb[0].mxu0
    %629 = vmatprep.mubr.bf16.mxu0 0
    %630 = vmatmul.mubr.bf16.gmra.mrb[0].mxu0 %v496
    %v631 = vpop.f32.mrb[0].mxu0
    %v632 = vadd.f32 %v531, %v631
    %v633 = vpop.f32.mrb[0].mxu0
    %v634 = vpop.f32.mrb[0].mxu0
    %v635 = vadd.f32 %v531, %v634
    %v636 = vpop.f32.mrb[0].mxu0
    %637 = vmatprep.mubr.bf16.mxu0 0
    %638 = vmatmul.mubr.bf16.gmra.mrb[0].mxu0 %v497
    %v639 = vpop.f32.mrb[0].mxu0
    %v640 = vadd.f32 %v531, %v639
    %v641 = vpop.f32.mrb[0].mxu0
    %v642 = vpop.f32.mrb[0].mxu0
    %v643 = vadd.f32 %v531, %v642
    %v644 = vpop.f32.mrb[0].mxu0
    %645 = vmatprep.mubr.bf16.mxu0 0
    %646 = vmatmul.mubr.bf16.gmra.mrb[0].mxu0 %v498
    %v647 = vpop.f32.mrb[0].mxu0
    %v648 = vadd.f32 %v531, %v647
    %v649 = vpop.f32.mrb[0].mxu0
    %v650 = vpop.f32.mrb[0].mxu0
    %v651 = vadd.f32 %v531, %v650
    %v652 = vpop.f32.mrb[0].mxu0
    %653 = vmatprep.mubr.bf16.mxu0 0
    %654 = vmatmul.mubr.bf16.gmra.mrb[0].mxu0 %v499
    %v655 = vpop.f32.mrb[0].mxu0
    %v656 = vadd.f32 %v531, %v655
    %v657 = vpop.f32.mrb[0].mxu0
    %v658 = vpop.f32.mrb[0].mxu0
    %v659 = vadd.f32 %v531, %v658
    %v660 = vpop.f32.mrb[0].mxu0
    %661 = vmatprep.mubr.bf16.mxu0 0
    %662 = vmatmul.mubr.bf16.gmra.mrb[0].mxu0 %v500
    %v663 = vpop.f32.mrb[0].mxu0
    %v664 = vadd.f32 %v531, %v663
    %v665 = vpop.f32.mrb[0].mxu0
    %v666 = vpop.f32.mrb[0].mxu0
    %v667 = vadd.f32 %v531, %v666
    %v668 = vpop.f32.mrb[0].mxu0
    %669 = vmatprep.mubr.bf16.mxu0 0
    %670 = vmatmul.mubr.bf16.gmra.mrb[0].mxu0 %v501
    %v671 = vpop.f32.mrb[0].mxu0
    %v672 = vadd.f32 %v531, %v671
    %v673 = vpop.f32.mrb[0].mxu0
    %v674 = vpop.f32.mrb[0].mxu0
    %v675 = vadd.f32 %v531, %v674
    %v676 = vpop.f32.mrb[0].mxu0
    %677 = vmatprep.mubr.bf16.mxu0 0
    %678 = vmatmul.mubr.bf16.gmra.mrb[0].mxu0 %v502
    %v679 = vpop.f32.mrb[0].mxu0
    %v680 = vadd.f32 %v531, %v679
    %v681 = vpop.f32.mrb[0].mxu0
    %v682 = vpop.f32.mrb[0].mxu0
    %v683 = vadd.f32 %v531, %v682
    %v684 = vpop.f32.mrb[0].mxu0
    %685 = vmatprep.mubr.bf16.mxu0 0
    %686 = vmatmul.mubr.bf16.gmra.mrb[0].mxu0 %v503
    %v687 = vpop.f32.mrb[0].mxu0
    %v688 = vadd.f32 %v531, %v687
    %v689 = vpop.f32.mrb[0].mxu0
    %v690 = vpop.f32.mrb[0].mxu0
    %v691 = vadd.f32 %v531, %v690
    %v692 = vpop.f32.mrb[0].mxu0
    %693 = vmatprep.mubr.bf16.mxu0 0
    %694 = vmatmul.mubr.bf16.gmra.mrb[0].mxu0 %v504
    %v695 = vpop.f32.mrb[0].mxu0
    %v696 = vadd.f32 %v531, %v695
    %v697 = vpop.f32.mrb[0].mxu0
    %v698 = vpop.f32.mrb[0].mxu0
    %v699 = vadd.f32 %v531, %v698
    %v700 = vpop.f32.mrb[0].mxu0
    %701 = vmatprep.mubr.bf16.mxu0 0
    %702 = vmatmul.mubr.bf16.gmra.mrb[0].mxu0 %v505
    %v703 = vpop.f32.mrb[0].mxu0
    %v704 = vadd.f32 %v531, %v703
    %v705 = vpop.f32.mrb[0].mxu0
    %v706 = vpop.f32.mrb[0].mxu0
    %v707 = vadd.f32 %v531, %v706
    %v708 = vpop.f32.mrb[0].mxu0
    %709 = vmatprep.mubr.bf16.mxu0 0
    %710 = vmatmul.mubr.bf16.gmra.mrb[0].mxu0 %v506
    %v711 = vpop.f32.mrb[0].mxu0
    %v712 = vadd.f32 %v531, %v711
    %v713 = vpop.f32.mrb[0].mxu0
    %v714 = vpop.f32.mrb[0].mxu0
    %v715 = vadd.f32 %v531, %v714
    %v716 = vpop.f32.mrb[0].mxu0
    %717 = vmatprep.mubr.bf16.mxu0 0
    %718 = vmatmul.mubr.bf16.gmra.mrb[0].mxu0 %v507
    %v719 = vpop.f32.mrb[0].mxu0
    %v720 = vadd.f32 %v531, %v719
    %v721 = vpop.f32.mrb[0].mxu0
    %v722 = vpop.f32.mrb[0].mxu0
    %v723 = vadd.f32 %v531, %v722
    %v724 = vpop.f32.mrb[0].mxu0
    %725 = vmatprep.mubr.bf16.mxu0 0
    %726 = vmatmul.mubr.bf16.gmra.mrb[0].mxu0 %v508
    %v727 = vpop.f32.mrb[0].mxu0
    %v728 = vadd.f32 %v531, %v727
    %v729 = vpop.f32.mrb[0].mxu0
    %v730 = vpop.f32.mrb[0].mxu0
    %v731 = vadd.f32 %v531, %v730
    %v732 = vpop.f32.mrb[0].mxu0
    %733 = vmatprep.mubr.bf16.mxu0 0
    %734 = vmatmul.mubr.bf16.gmra.mrb[0].mxu0 %v509
    %v735 = vpop.f32.mrb[0].mxu0
    %v736 = vadd.f32 %v531, %v735
    %v737 = vpop.f32.mrb[0].mxu0
    %v738 = vpop.f32.mrb[0].mxu0
    %v739 = vadd.f32 %v531, %v738
    %v740 = vpop.f32.mrb[0].mxu0
    %741 = vdwg.mxu0
    %v742 = vmax.f32 %v616, 0.0
    %v743 = vmax.f32 %v619, 0.0
    %v744 = vmax.f32 %v624, 0.0
    %v745 = vmax.f32 %v627, 0.0
    %v746 = vmax.f32 %v632, 0.0
    %v747 = vmax.f32 %v635, 0.0
    %v748 = vmax.f32 %v640, 0.0
    %v749 = vmax.f32 %v643, 0.0
    %v750 = vmax.f32 %v648, 0.0
    %v751 = vmax.f32 %v651, 0.0
    %v752 = vmax.f32 %v656, 0.0
    %v753 = vmax.f32 %v659, 0.0
    %v754 = vmax.f32 %v664, 0.0
    %v755 = vmax.f32 %v667, 0.0
    %v756 = vmax.f32 %v672, 0.0
    %v757 = vmax.f32 %v675, 0.0
    %v758 = vmax.f32 %v680, 0.0
    %v759 = vmax.f32 %v683, 0.0
    %v760 = vmax.f32 %v688, 0.0
    %v761 = vmax.f32 %v691, 0.0
    %v762 = vmax.f32 %v696, 0.0
    %v763 = vmax.f32 %v699, 0.0
    %v764 = vmax.f32 %v704, 0.0
    %v765 = vmax.f32 %v707, 0.0
    %v766 = vmax.f32 %v712, 0.0
    %v767 = vmax.f32 %v715, 0.0
    %v768 = vmax.f32 %v720, 0.0
    %v769 = vmax.f32 %v723, 0.0
    %v770 = vmax.f32 %v728, 0.0
    %v771 = vmax.f32 %v731, 0.0
    %v772 = vmax.f32 %v736, 0.0
    %v773 = vmax.f32 %v739, 0.0
    %v774 = vpack.c.bf16 %v743, %v742
    %v775 = vpack.c.bf16 %v745, %v744
    %v776 = vpack.c.bf16 %v747, %v746
    %v777 = vpack.c.bf16 %v749, %v748
    %v778 = vpack.c.bf16 %v751, %v750
    %v779 = vpack.c.bf16 %v753, %v752
    %v780 = vpack.c.bf16 %v755, %v754
    %v781 = vpack.c.bf16 %v757, %v756
    %v782 = vpack.c.bf16 %v759, %v758
    %v783 = vpack.c.bf16 %v761, %v760
    %v784 = vpack.c.bf16 %v763, %v762
    %v785 = vpack.c.bf16 %v765, %v764
    %v786 = vpack.c.bf16 %v767, %v766
    %v787 = vpack.c.bf16 %v769, %v768
    %v788 = vpack.c.bf16 %v771, %v770
    %v789 = vpack.c.bf16 %v773, %v772
    %v790 = vld [vmem:[#allocation8] sm:$0xf]
    %v791 = vld [vmem:[#allocation8 + $0x4] sm:$0xf]
    %v792 = vld [vmem:[#allocation8 + $0x8] sm:$0xf]
    %v793 = vld [vmem:[#allocation8 + $0xc] sm:$0xf]
    %v794 = vld [vmem:[#allocation8 + $0x10] sm:$0xf]
    %v795 = vld [vmem:[#allocation8 + $0x14] sm:$0xf]
    %v796 = vld [vmem:[#allocation8 + $0x18] sm:$0xf]
    %v797 = vld [vmem:[#allocation8 + $0x1c] sm:$0xf]
    %v798 = vld [vmem:[#allocation8 + $0x20] sm:$0xf]
    %v799 = vld [vmem:[#allocation8 + $0x24] sm:$0xf]
    %v800 = vld [vmem:[#allocation8 + $0x28] sm:$0xf]
    %v801 = vld [vmem:[#allocation8 + $0x2c] sm:$0xf]
    %v802 = vld [vmem:[#allocation8 + $0x30] sm:$0xf]
    %v803 = vld [vmem:[#allocation8 + $0x34] sm:$0xf]
    %v804 = vld [vmem:[#allocation8 + $0x38] sm:$0xf]
    %v805 = vld [vmem:[#allocation8 + $0x3c] sm:$0xf]
    %v806 = vld [vmem:[%s6] sm:$0x1]
    %v808 = vlaneseq
    %v809 = vshrl.u32 %v808, 7
    %v810 = vsub.s32 0, %v809
    %v811 = vrot.slane %v806, %v810
    %v829 = vunpack.c.l.b16 %v790
    %v830 = vunpack.c.l.b16 %v791
    %v831 = vunpack.c.l.b16 %v792
    %v832 = vunpack.c.l.b16 %v793
    %v833 = vunpack.c.l.b16 %v794
    %v834 = vunpack.c.l.b16 %v795
    %v835 = vunpack.c.l.b16 %v796
    %v836 = vunpack.c.l.b16 %v797
    %v837 = vunpack.c.l.b16 %v798
    %v838 = vunpack.c.l.b16 %v799
    %v839 = vunpack.c.l.b16 %v800
    %v840 = vunpack.c.l.b16 %v801
    %v841 = vunpack.c.l.b16 %v802
    %v842 = vunpack.c.l.b16 %v803
    %v843 = vunpack.c.l.b16 %v804
    %v844 = vunpack.c.l.b16 %v805
    %v845 = vpack.c.b16 %v830, %v829
    %v846 = vpack.c.b16 %v832, %v831
    %v847 = vpack.c.b16 %v834, %v833
    %v848 = vpack.c.b16 %v836, %v835
    %v849 = vpack.c.b16 %v838, %v837
    %v850 = vpack.c.b16 %v840, %v839
    %v851 = vpack.c.b16 %v842, %v841
    %v852 = vpack.c.b16 %v844, %v843
    %861 = vmatprep.subr.bf16.mxu0 0
    %862 = vmatpush1.bf16.msra.mxu0 %v845
    %863 = vmatprep.subr.bf16.mxu0 0
    %864 = vmatpush1.bf16.msra.mxu0 %v846
    %865 = vmatprep.subr.bf16.mxu0 0
    %866 = vmatpush1.bf16.msra.mxu0 %v847
    %867 = vmatprep.subr.bf16.mxu0 0
    %868 = vmatpush1.bf16.msra.mxu0 %v848
    %869 = vmatprep.subr.bf16.mxu0 0
    %870 = vmatpush1.bf16.msra.mxu0 %v849
    %871 = vmatprep.subr.bf16.mxu0 0
    %872 = vmatpush1.bf16.msra.mxu0 %v850
    %873 = vmatprep.subr.bf16.mxu0 0
    %874 = vmatpush1.bf16.msra.mxu0 %v851
    %875 = vmatprep.subr.bf16.mxu0 0
    %876 = vmatpush1.bf16.msra.mxu0 %v852
    %877 = vmatprep.subr.bf16.mxu0 0
    %878 = vmatpush1.bf16.msra.mxu0 0
    %879 = vmatprep.subr.bf16.mxu0 0
    %880 = vmatpush1.bf16.msra.mxu0 0
    %881 = vmatprep.subr.bf16.mxu0 0
    %882 = vmatpush1.bf16.msra.mxu0 0
    %883 = vmatprep.subr.bf16.mxu0 0
    %884 = vmatpush1.bf16.msra.mxu0 0
    %885 = vmatprep.subr.bf16.mxu0 0
    %886 = vmatpush1.bf16.msra.mxu0 0
    %887 = vmatprep.subr.bf16.mxu0 0
    %888 = vmatpush1.bf16.msra.mxu0 0
    %889 = vmatprep.subr.bf16.mxu0 0
    %890 = vmatpush1.bf16.msra.mxu0 0
    %891 = vmatprep.subr.bf16.mxu0 0
    %892 = vmatpush1.bf16.msra.mxu0 0
    %893 = vmatprep.mubr.bf16.mxu0 0
    %894 = vmatmul.mubr.bf16.gmra.mrb[0].mxu0 %v774
    %v895 = vpop.f32.mrb[0].mxu0
    %v896 = vadd.f32 %v811, %v895
    %v897 = vpop.f32.mrb[0].mxu0
    %v898 = vpop.f32.mrb[0].mxu0
    %v899 = vadd.f32 %v811, %v898
    %v900 = vpop.f32.mrb[0].mxu0
    %901 = vmatprep.mubr.bf16.mxu0 0
    %902 = vmatmul.mubr.bf16.gmra.mrb[0].mxu0 %v775
    %v903 = vpop.f32.mrb[0].mxu0
    %v904 = vadd.f32 %v811, %v903
    %v905 = vpop.f32.mrb[0].mxu0
    %v906 = vpop.f32.mrb[0].mxu0
    %v907 = vadd.f32 %v811, %v906
    %v908 = vpop.f32.mrb[0].mxu0
    %909 = vmatprep.mubr.bf16.mxu0 0
    %910 = vmatmul.mubr.bf16.gmra.mrb[0].mxu0 %v776
    %v911 = vpop.f32.mrb[0].mxu0
    %v912 = vadd.f32 %v811, %v911
    %v913 = vpop.f32.mrb[0].mxu0
    %v914 = vpop.f32.mrb[0].mxu0
    %v915 = vadd.f32 %v811, %v914
    %v916 = vpop.f32.mrb[0].mxu0
    %917 = vmatprep.mubr.bf16.mxu0 0
    %918 = vmatmul.mubr.bf16.gmra.mrb[0].mxu0 %v777
    %v919 = vpop.f32.mrb[0].mxu0
    %v920 = vadd.f32 %v811, %v919
    %v921 = vpop.f32.mrb[0].mxu0
    %v922 = vpop.f32.mrb[0].mxu0
    %v923 = vadd.f32 %v811, %v922
    %v924 = vpop.f32.mrb[0].mxu0
    %925 = vmatprep.mubr.bf16.mxu0 0
    %926 = vmatmul.mubr.bf16.gmra.mrb[0].mxu0 %v778
    %v927 = vpop.f32.mrb[0].mxu0
    %v928 = vadd.f32 %v811, %v927
    %v929 = vpop.f32.mrb[0].mxu0
    %v930 = vpop.f32.mrb[0].mxu0
    %v931 = vadd.f32 %v811, %v930
    %v932 = vpop.f32.mrb[0].mxu0
    %933 = vmatprep.mubr.bf16.mxu0 0
    %934 = vmatmul.mubr.bf16.gmra.mrb[0].mxu0 %v779
    %v935 = vpop.f32.mrb[0].mxu0
    %v936 = vadd.f32 %v811, %v935
    %v937 = vpop.f32.mrb[0].mxu0
    %v938 = vpop.f32.mrb[0].mxu0
    %v939 = vadd.f32 %v811, %v938
    %v940 = vpop.f32.mrb[0].mxu0
    %941 = vmatprep.mubr.bf16.mxu0 0
    %942 = vmatmul.mubr.bf16.gmra.mrb[0].mxu0 %v780
    %v943 = vpop.f32.mrb[0].mxu0
    %v944 = vadd.f32 %v811, %v943
    %v945 = vpop.f32.mrb[0].mxu0
    %v946 = vpop.f32.mrb[0].mxu0
    %v947 = vadd.f32 %v811, %v946
    %v948 = vpop.f32.mrb[0].mxu0
    %949 = vmatprep.mubr.bf16.mxu0 0
    %950 = vmatmul.mubr.bf16.gmra.mrb[0].mxu0 %v781
    %v951 = vpop.f32.mrb[0].mxu0
    %v952 = vadd.f32 %v811, %v951
    %v953 = vpop.f32.mrb[0].mxu0
    %v954 = vpop.f32.mrb[0].mxu0
    %v955 = vadd.f32 %v811, %v954
    %v956 = vpop.f32.mrb[0].mxu0
    %957 = vmatprep.mubr.bf16.mxu0 0
    %958 = vmatmul.mubr.bf16.gmra.mrb[0].mxu0 %v782
    %v959 = vpop.f32.mrb[0].mxu0
    %v960 = vadd.f32 %v811, %v959
    %v961 = vpop.f32.mrb[0].mxu0
    %v962 = vpop.f32.mrb[0].mxu0
    %v963 = vadd.f32 %v811, %v962
    %v964 = vpop.f32.mrb[0].mxu0
    %965 = vmatprep.mubr.bf16.mxu0 0
    %966 = vmatmul.mubr.bf16.gmra.mrb[0].mxu0 %v783
    %v967 = vpop.f32.mrb[0].mxu0
    %v968 = vadd.f32 %v811, %v967
    %v969 = vpop.f32.mrb[0].mxu0
    %v970 = vpop.f32.mrb[0].mxu0
    %v971 = vadd.f32 %v811, %v970
    %v972 = vpop.f32.mrb[0].mxu0
    %973 = vmatprep.mubr.bf16.mxu0 0
    %974 = vmatmul.mubr.bf16.gmra.mrb[0].mxu0 %v784
    %v975 = vpop.f32.mrb[0].mxu0
    %v976 = vadd.f32 %v811, %v975
    %v977 = vpop.f32.mrb[0].mxu0
    %v978 = vpop.f32.mrb[0].mxu0
    %v979 = vadd.f32 %v811, %v978
    %v980 = vpop.f32.mrb[0].mxu0
    %981 = vmatprep.mubr.bf16.mxu0 0
    %982 = vmatmul.mubr.bf16.gmra.mrb[0].mxu0 %v785
    %v983 = vpop.f32.mrb[0].mxu0
    %v984 = vadd.f32 %v811, %v983
    %v985 = vpop.f32.mrb[0].mxu0
    %v986 = vpop.f32.mrb[0].mxu0
    %v987 = vadd.f32 %v811, %v986
    %v988 = vpop.f32.mrb[0].mxu0
    %989 = vmatprep.mubr.bf16.mxu0 0
    %990 = vmatmul.mubr.bf16.gmra.mrb[0].mxu0 %v786
    %v991 = vpop.f32.mrb[0].mxu0
    %v992 = vadd.f32 %v811, %v991
    %v993 = vpop.f32.mrb[0].mxu0
    %v994 = vpop.f32.mrb[0].mxu0
    %v995 = vadd.f32 %v811, %v994
    %v996 = vpop.f32.mrb[0].mxu0
    %997 = vmatprep.mubr.bf16.mxu0 0
    %998 = vmatmul.mubr.bf16.gmra.mrb[0].mxu0 %v787
    %v999 = vpop.f32.mrb[0].mxu0
    %v1000 = vadd.f32 %v811, %v999
    %v1001 = vpop.f32.mrb[0].mxu0
    %v1002 = vpop.f32.mrb[0].mxu0
    %v1003 = vadd.f32 %v811, %v1002
    %v1004 = vpop.f32.mrb[0].mxu0
    %1005 = vmatprep.mubr.bf16.mxu0 0
    %1006 = vmatmul.mubr.bf16.gmra.mrb[0].mxu0 %v788
    %v1007 = vpop.f32.mrb[0].mxu0
    %v1008 = vadd.f32 %v811, %v1007
    %v1009 = vpop.f32.mrb[0].mxu0
    %v1010 = vpop.f32.mrb[0].mxu0
    %v1011 = vadd.f32 %v811, %v1010
    %v1012 = vpop.f32.mrb[0].mxu0
    %1013 = vmatprep.mubr.bf16.mxu0 0
    %1014 = vmatmul.mubr.bf16.gmra.mrb[0].mxu0 %v789
    %v1015 = vpop.f32.mrb[0].mxu0
    %v1016 = vadd.f32 %v811, %v1015
    %v1017 = vpop.f32.mrb[0].mxu0
    %v1018 = vpop.f32.mrb[0].mxu0
    %v1019 = vadd.f32 %v811, %v1018
    %v1020 = vpop.f32.mrb[0].mxu0
    %1021 = vdwg.mxu0
    %v1022 = vmax.f32 %v896, 0.0
    %v1023 = vmax.f32 %v899, 0.0
    %v1024 = vmax.f32 %v904, 0.0
    %v1025 = vmax.f32 %v907, 0.0
    %v1026 = vmax.f32 %v912, 0.0
    %v1027 = vmax.f32 %v915, 0.0
    %v1028 = vmax.f32 %v920, 0.0
    %v1029 = vmax.f32 %v923, 0.0
    %v1030 = vmax.f32 %v928, 0.0
    %v1031 = vmax.f32 %v931, 0.0
    %v1032 = vmax.f32 %v936, 0.0
    %v1033 = vmax.f32 %v939, 0.0
    %v1034 = vmax.f32 %v944, 0.0
    %v1035 = vmax.f32 %v947, 0.0
    %v1036 = vmax.f32 %v952, 0.0
    %v1037 = vmax.f32 %v955, 0.0
    %v1038 = vmax.f32 %v960, 0.0
    %v1039 = vmax.f32 %v963, 0.0
    %v1040 = vmax.f32 %v968, 0.0
    %v1041 = vmax.f32 %v971, 0.0
    %v1042 = vmax.f32 %v976, 0.0
    %v1043 = vmax.f32 %v979, 0.0
    %v1044 = vmax.f32 %v984, 0.0
    %v1045 = vmax.f32 %v987, 0.0
    %v1046 = vmax.f32 %v992, 0.0
    %v1047 = vmax.f32 %v995, 0.0
    %v1048 = vmax.f32 %v1000, 0.0
    %v1049 = vmax.f32 %v1003, 0.0
    %v1050 = vmax.f32 %v1008, 0.0
    %v1051 = vmax.f32 %v1011, 0.0
    %v1052 = vmax.f32 %v1016, 0.0
    %v1053 = vmax.f32 %v1019, 0.0
    %v1054 = vpack.c.bf16 %v1023, %v1022
    %v1055 = vpack.c.bf16 %v1025, %v1024
    %v1056 = vpack.c.bf16 %v1027, %v1026
    %v1057 = vpack.c.bf16 %v1029, %v1028
    %v1058 = vpack.c.bf16 %v1031, %v1030
    %v1059 = vpack.c.bf16 %v1033, %v1032
    %v1060 = vpack.c.bf16 %v1035, %v1034
    %v1061 = vpack.c.bf16 %v1037, %v1036
    %v1062 = vpack.c.bf16 %v1039, %v1038
    %v1063 = vpack.c.bf16 %v1041, %v1040
    %v1064 = vpack.c.bf16 %v1043, %v1042
    %v1065 = vpack.c.bf16 %v1045, %v1044
    %v1066 = vpack.c.bf16 %v1047, %v1046
    %v1067 = vpack.c.bf16 %v1049, %v1048
    %v1068 = vpack.c.bf16 %v1051, %v1050
    %v1069 = vpack.c.bf16 %v1053, %v1052
    %v1070 = vld [vmem:[#allocation10] sm:$0xf]
    %v1071 = vld [vmem:[#allocation10 + $0x4] sm:$0xf]
    %v1072 = vld [vmem:[#allocation10 + $0x8] sm:$0xf]
    %v1073 = vld [vmem:[#allocation10 + $0xc] sm:$0xf]
    %v1074 = vld [vmem:[#allocation10 + $0x10] sm:$0xf]
    %v1075 = vld [vmem:[#allocation10 + $0x14] sm:$0xf]
    %v1076 = vld [vmem:[#allocation10 + $0x18] sm:$0xf]
    %v1077 = vld [vmem:[#allocation10 + $0x1c] sm:$0xf]
    %v1078 = vld [vmem:[#allocation10 + $0x20] sm:$0xf]
    %v1079 = vld [vmem:[#allocation10 + $0x24] sm:$0xf]
    %v1080 = vld [vmem:[#allocation10 + $0x28] sm:$0xf]
    %v1081 = vld [vmem:[#allocation10 + $0x2c] sm:$0xf]
    %v1082 = vld [vmem:[#allocation10 + $0x30] sm:$0xf]
    %v1083 = vld [vmem:[#allocation10 + $0x34] sm:$0xf]
    %v1084 = vld [vmem:[#allocation10 + $0x38] sm:$0xf]
    %v1085 = vld [vmem:[#allocation10 + $0x3c] sm:$0xf]
    %v1086 = vld [vmem:[%s8] sm:$0x1]
    %v1088 = vlaneseq
    %v1089 = vshrl.u32 %v1088, 7
    %v1090 = vsub.s32 0, %v1089
    %v1091 = vrot.slane %v1086, %v1090
    %v1109 = vunpack.c.l.b16 %v1070
    %v1110 = vunpack.c.l.b16 %v1071
    %v1111 = vunpack.c.l.b16 %v1072
    %v1112 = vunpack.c.l.b16 %v1073
    %v1113 = vunpack.c.l.b16 %v1074
    %v1114 = vunpack.c.l.b16 %v1075
    %v1115 = vunpack.c.l.b16 %v1076
    %v1116 = vunpack.c.l.b16 %v1077
    %v1117 = vunpack.c.l.b16 %v1078
    %v1118 = vunpack.c.l.b16 %v1079
    %v1119 = vunpack.c.l.b16 %v1080
    %v1120 = vunpack.c.l.b16 %v1081
    %v1121 = vunpack.c.l.b16 %v1082
    %v1122 = vunpack.c.l.b16 %v1083
    %v1123 = vunpack.c.l.b16 %v1084
    %v1124 = vunpack.c.l.b16 %v1085
    %v1125 = vpack.c.b16 %v1110, %v1109
    %v1126 = vpack.c.b16 %v1112, %v1111
    %v1127 = vpack.c.b16 %v1114, %v1113
    %v1128 = vpack.c.b16 %v1116, %v1115
    %v1129 = vpack.c.b16 %v1118, %v1117
    %v1130 = vpack.c.b16 %v1120, %v1119
    %v1131 = vpack.c.b16 %v1122, %v1121
    %v1132 = vpack.c.b16 %v1124, %v1123
    %1141 = vmatprep.subr.bf16.mxu0 0
    %1142 = vmatpush1.bf16.msra.mxu0 %v1125
    %1143 = vmatprep.subr.bf16.mxu0 0
    %1144 = vmatpush1.bf16.msra.mxu0 %v1126
    %1145 = vmatprep.subr.bf16.mxu0 0
    %1146 = vmatpush1.bf16.msra.mxu0 %v1127
    %1147 = vmatprep.subr.bf16.mxu0 0
    %1148 = vmatpush1.bf16.msra.mxu0 %v1128
    %1149 = vmatprep.subr.bf16.mxu0 0
    %1150 = vmatpush1.bf16.msra.mxu0 %v1129
    %1151 = vmatprep.subr.bf16.mxu0 0
    %1152 = vmatpush1.bf16.msra.mxu0 %v1130
    %1153 = vmatprep.subr.bf16.mxu0 0
    %1154 = vmatpush1.bf16.msra.mxu0 %v1131
    %1155 = vmatprep.subr.bf16.mxu0 0
    %1156 = vmatpush1.bf16.msra.mxu0 %v1132
    %1157 = vmatprep.subr.bf16.mxu0 0
    %1158 = vmatpush1.bf16.msra.mxu0 0
    %1159 = vmatprep.subr.bf16.mxu0 0
    %1160 = vmatpush1.bf16.msra.mxu0 0
    %1161 = vmatprep.subr.bf16.mxu0 0
    %1162 = vmatpush1.bf16.msra.mxu0 0
    %1163 = vmatprep.subr.bf16.mxu0 0
    %1164 = vmatpush1.bf16.msra.mxu0 0
    %1165 = vmatprep.subr.bf16.mxu0 0
    %1166 = vmatpush1.bf16.msra.mxu0 0
    %1167 = vmatprep.subr.bf16.mxu0 0
    %1168 = vmatpush1.bf16.msra.mxu0 0
    %1169 = vmatprep.subr.bf16.mxu0 0
    %1170 = vmatpush1.bf16.msra.mxu0 0
    %1171 = vmatprep.subr.bf16.mxu0 0
    %1172 = vmatpush1.bf16.msra.mxu0 0
    %1173 = vmatprep.mubr.bf16.mxu0 0
    %1174 = vmatmul.mubr.bf16.gmra.mrb[0].mxu0 %v1054
    %v1175 = vpop.f32.mrb[0].mxu0
    %v1176 = vadd.f32 %v1091, %v1175
    %v1177 = vpop.f32.mrb[0].mxu0
    %v1178 = vpop.f32.mrb[0].mxu0
    %v1179 = vadd.f32 %v1091, %v1178
    %v1180 = vpop.f32.mrb[0].mxu0
    %1181 = vmatprep.mubr.bf16.mxu0 0
    %1182 = vmatmul.mubr.bf16.gmra.mrb[0].mxu0 %v1055
    %v1183 = vpop.f32.mrb[0].mxu0
    %v1184 = vadd.f32 %v1091, %v1183
    %v1185 = vpop.f32.mrb[0].mxu0
    %v1186 = vpop.f32.mrb[0].mxu0
    %v1187 = vadd.f32 %v1091, %v1186
    %v1188 = vpop.f32.mrb[0].mxu0
    %1189 = vmatprep.mubr.bf16.mxu0 0
    %1190 = vmatmul.mubr.bf16.gmra.mrb[0].mxu0 %v1056
    %v1191 = vpop.f32.mrb[0].mxu0
    %v1192 = vadd.f32 %v1091, %v1191
    %v1193 = vpop.f32.mrb[0].mxu0
    %v1194 = vpop.f32.mrb[0].mxu0
    %v1195 = vadd.f32 %v1091, %v1194
    %v1196 = vpop.f32.mrb[0].mxu0
    %1197 = vmatprep.mubr.bf16.mxu0 0
    %1198 = vmatmul.mubr.bf16.gmra.mrb[0].mxu0 %v1057
    %v1199 = vpop.f32.mrb[0].mxu0
    %v1200 = vadd.f32 %v1091, %v1199
    %v1201 = vpop.f32.mrb[0].mxu0
    %v1202 = vpop.f32.mrb[0].mxu0
    %v1203 = vadd.f32 %v1091, %v1202
    %v1204 = vpop.f32.mrb[0].mxu0
    %1205 = vmatprep.mubr.bf16.mxu0 0
    %1206 = vmatmul.mubr.bf16.gmra.mrb[0].mxu0 %v1058
    %v1207 = vpop.f32.mrb[0].mxu0
    %v1208 = vadd.f32 %v1091, %v1207
    %v1209 = vpop.f32.mrb[0].mxu0
    %v1210 = vpop.f32.mrb[0].mxu0
    %v1211 = vadd.f32 %v1091, %v1210
    %v1212 = vpop.f32.mrb[0].mxu0
    %1213 = vmatprep.mubr.bf16.mxu0 0
    %1214 = vmatmul.mubr.bf16.gmra.mrb[0].mxu0 %v1059
    %v1215 = vpop.f32.mrb[0].mxu0
    %v1216 = vadd.f32 %v1091, %v1215
    %v1217 = vpop.f32.mrb[0].mxu0
    %v1218 = vpop.f32.mrb[0].mxu0
    %v1219 = vadd.f32 %v1091, %v1218
    %v1220 = vpop.f32.mrb[0].mxu0
    %1221 = vmatprep.mubr.bf16.mxu0 0
    %1222 = vmatmul.mubr.bf16.gmra.mrb[0].mxu0 %v1060
    %v1223 = vpop.f32.mrb[0].mxu0
    %v1224 = vadd.f32 %v1091, %v1223
    %v1225 = vpop.f32.mrb[0].mxu0
    %v1226 = vpop.f32.mrb[0].mxu0
    %v1227 = vadd.f32 %v1091, %v1226
    %v1228 = vpop.f32.mrb[0].mxu0
    %1229 = vmatprep.mubr.bf16.mxu0 0
    %1230 = vmatmul.mubr.bf16.gmra.mrb[0].mxu0 %v1061
    %v1231 = vpop.f32.mrb[0].mxu0
    %v1232 = vadd.f32 %v1091, %v1231
    %v1233 = vpop.f32.mrb[0].mxu0
    %v1234 = vpop.f32.mrb[0].mxu0
    %v1235 = vadd.f32 %v1091, %v1234
    %v1236 = vpop.f32.mrb[0].mxu0
    %1237 = vmatprep.mubr.bf16.mxu0 0
    %1238 = vmatmul.mubr.bf16.gmra.mrb[0].mxu0 %v1062
    %v1239 = vpop.f32.mrb[0].mxu0
    %v1240 = vadd.f32 %v1091, %v1239
    %v1241 = vpop.f32.mrb[0].mxu0
    %v1242 = vpop.f32.mrb[0].mxu0
    %v1243 = vadd.f32 %v1091, %v1242
    %v1244 = vpop.f32.mrb[0].mxu0
    %1245 = vmatprep.mubr.bf16.mxu0 0
    %1246 = vmatmul.mubr.bf16.gmra.mrb[0].mxu0 %v1063
    %v1247 = vpop.f32.mrb[0].mxu0
    %v1248 = vadd.f32 %v1091, %v1247
    %v1249 = vpop.f32.mrb[0].mxu0
    %v1250 = vpop.f32.mrb[0].mxu0
    %v1251 = vadd.f32 %v1091, %v1250
    %v1252 = vpop.f32.mrb[0].mxu0
    %1253 = vmatprep.mubr.bf16.mxu0 0
    %1254 = vmatmul.mubr.bf16.gmra.mrb[0].mxu0 %v1064
    %v1255 = vpop.f32.mrb[0].mxu0
    %v1256 = vadd.f32 %v1091, %v1255
    %v1257 = vpop.f32.mrb[0].mxu0
    %v1258 = vpop.f32.mrb[0].mxu0
    %v1259 = vadd.f32 %v1091, %v1258
    %v1260 = vpop.f32.mrb[0].mxu0
    %1261 = vmatprep.mubr.bf16.mxu0 0
    %1262 = vmatmul.mubr.bf16.gmra.mrb[0].mxu0 %v1065
    %v1263 = vpop.f32.mrb[0].mxu0
    %v1264 = vadd.f32 %v1091, %v1263
    %v1265 = vpop.f32.mrb[0].mxu0
    %v1266 = vpop.f32.mrb[0].mxu0
    %v1267 = vadd.f32 %v1091, %v1266
    %v1268 = vpop.f32.mrb[0].mxu0
    %1269 = vmatprep.mubr.bf16.mxu0 0
    %1270 = vmatmul.mubr.bf16.gmra.mrb[0].mxu0 %v1066
    %v1271 = vpop.f32.mrb[0].mxu0
    %v1272 = vadd.f32 %v1091, %v1271
    %v1273 = vpop.f32.mrb[0].mxu0
    %v1274 = vpop.f32.mrb[0].mxu0
    %v1275 = vadd.f32 %v1091, %v1274
    %v1276 = vpop.f32.mrb[0].mxu0
    %1277 = vmatprep.mubr.bf16.mxu0 0
    %1278 = vmatmul.mubr.bf16.gmra.mrb[0].mxu0 %v1067
    %v1279 = vpop.f32.mrb[0].mxu0
    %v1280 = vadd.f32 %v1091, %v1279
    %v1281 = vpop.f32.mrb[0].mxu0
    %v1282 = vpop.f32.mrb[0].mxu0
    %v1283 = vadd.f32 %v1091, %v1282
    %v1284 = vpop.f32.mrb[0].mxu0
    %1285 = vmatprep.mubr.bf16.mxu0 0
    %1286 = vmatmul.mubr.bf16.gmra.mrb[0].mxu0 %v1068
    %v1287 = vpop.f32.mrb[0].mxu0
    %v1288 = vadd.f32 %v1091, %v1287
    %v1289 = vpop.f32.mrb[0].mxu0
    %v1290 = vpop.f32.mrb[0].mxu0
    %v1291 = vadd.f32 %v1091, %v1290
    %v1292 = vpop.f32.mrb[0].mxu0
    %1293 = vmatprep.mubr.bf16.mxu0 0
    %1294 = vmatmul.mubr.bf16.gmra.mrb[0].mxu0 %v1069
    %v1295 = vpop.f32.mrb[0].mxu0
    %v1296 = vadd.f32 %v1091, %v1295
    %v1297 = vpop.f32.mrb[0].mxu0
    %v1298 = vpop.f32.mrb[0].mxu0
    %v1299 = vadd.f32 %v1091, %v1298
    %v1300 = vpop.f32.mrb[0].mxu0
    %1301 = vdwg.mxu0
    %v1302 = vpack.c.bf16 %v1179, %v1176
    %v1303 = vpack.c.bf16 %v1187, %v1184
    %v1304 = vpack.c.bf16 %v1195, %v1192
    %v1305 = vpack.c.bf16 %v1203, %v1200
    %v1306 = vpack.c.bf16 %v1211, %v1208
    %v1307 = vpack.c.bf16 %v1219, %v1216
    %v1308 = vpack.c.bf16 %v1227, %v1224
    %v1309 = vpack.c.bf16 %v1235, %v1232
    %v1310 = vpack.c.bf16 %v1243, %v1240
    %v1311 = vpack.c.bf16 %v1251, %v1248
    %v1312 = vpack.c.bf16 %v1259, %v1256
    %v1313 = vpack.c.bf16 %v1267, %v1264
    %v1314 = vpack.c.bf16 %v1275, %v1272
    %v1315 = vpack.c.bf16 %v1283, %v1280
    %v1316 = vpack.c.bf16 %v1291, %v1288
    %v1317 = vpack.c.bf16 %v1299, %v1296
    %v1334 = vunpack.c.l.b16 %v1302
    %v1335 = vunpack.c.h.b16 %v1302
    %v1336 = vunpack.c.l.b16 %v1303
    %v1337 = vunpack.c.h.b16 %v1303
    %v1338 = vunpack.c.l.b16 %v1304
    %v1339 = vunpack.c.h.b16 %v1304
    %v1340 = vunpack.c.l.b16 %v1305
    %v1341 = vunpack.c.h.b16 %v1305
    %v1342 = vunpack.c.l.b16 %v1306
    %v1343 = vunpack.c.h.b16 %v1306
    %v1344 = vunpack.c.l.b16 %v1307
    %v1345 = vunpack.c.h.b16 %v1307
    %v1346 = vunpack.c.l.b16 %v1308
    %v1347 = vunpack.c.h.b16 %v1308
    %v1348 = vunpack.c.l.b16 %v1309
    %v1349 = vunpack.c.h.b16 %v1309
    %v1350 = vunpack.c.l.b16 %v1310
    %v1351 = vunpack.c.h.b16 %v1310
    %v1352 = vunpack.c.l.b16 %v1311
    %v1353 = vunpack.c.h.b16 %v1311
    %v1354 = vunpack.c.l.b16 %v1312
    %v1355 = vunpack.c.h.b16 %v1312
    %v1356 = vunpack.c.l.b16 %v1313
    %v1357 = vunpack.c.h.b16 %v1313
    %v1358 = vunpack.c.l.b16 %v1314
    %v1359 = vunpack.c.h.b16 %v1314
    %v1360 = vunpack.c.l.b16 %v1315
    %v1361 = vunpack.c.h.b16 %v1315
    %v1362 = vunpack.c.l.b16 %v1316
    %v1363 = vunpack.c.h.b16 %v1316
    %v1364 = vunpack.c.l.b16 %v1317
    %v1365 = vunpack.c.h.b16 %v1317
    %v1366 = vpack.c.b16 %v1334, %v1334
    %v1367 = vpack.c.b16 %v1335, %v1335
    %v1368 = vpack.c.b16 %v1336, %v1336
    %v1369 = vpack.c.b16 %v1337, %v1337
    %v1370 = vpack.c.b16 %v1338, %v1338
    %v1371 = vpack.c.b16 %v1339, %v1339
    %v1372 = vpack.c.b16 %v1340, %v1340
    %v1373 = vpack.c.b16 %v1341, %v1341
    %v1374 = vpack.c.b16 %v1342, %v1342
    %v1375 = vpack.c.b16 %v1343, %v1343
    %v1376 = vpack.c.b16 %v1344, %v1344
    %v1377 = vpack.c.b16 %v1345, %v1345
    %v1378 = vpack.c.b16 %v1346, %v1346
    %v1379 = vpack.c.b16 %v1347, %v1347
    %v1380 = vpack.c.b16 %v1348, %v1348
    %v1381 = vpack.c.b16 %v1349, %v1349
    %v1382 = vpack.c.b16 %v1350, %v1350
    %v1383 = vpack.c.b16 %v1351, %v1351
    %v1384 = vpack.c.b16 %v1352, %v1352
    %v1385 = vpack.c.b16 %v1353, %v1353
    %v1386 = vpack.c.b16 %v1354, %v1354
    %v1387 = vpack.c.b16 %v1355, %v1355
    %v1388 = vpack.c.b16 %v1356, %v1356
    %v1389 = vpack.c.b16 %v1357, %v1357
    %v1390 = vpack.c.b16 %v1358, %v1358
    %v1391 = vpack.c.b16 %v1359, %v1359
    %v1392 = vpack.c.b16 %v1360, %v1360
    %v1393 = vpack.c.b16 %v1361, %v1361
    %v1394 = vpack.c.b16 %v1362, %v1362
    %v1395 = vpack.c.b16 %v1363, %v1363
    %v1396 = vpack.c.b16 %v1364, %v1364
    %v1397 = vpack.c.b16 %v1365, %v1365
    %1430 = vst [vmem:[#allocation11] sm:$0xf] %v1366
    %1431 = vst [vmem:[#allocation11 + $0x4] sm:$0xf] %v1367
    %1432 = vst [vmem:[#allocation11 + $0x8] sm:$0xf] %v1368
    %1433 = vst [vmem:[#allocation11 + $0xc] sm:$0xf] %v1369
    %1434 = vst [vmem:[#allocation11 + $0x10] sm:$0xf] %v1370
    %1435 = vst [vmem:[#allocation11 + $0x14] sm:$0xf] %v1371
    %1436 = vst [vmem:[#allocation11 + $0x18] sm:$0xf] %v1372
    %1437 = vst [vmem:[#allocation11 + $0x1c] sm:$0xf] %v1373
    %1438 = vst [vmem:[#allocation11 + $0x20] sm:$0xf] %v1374
    %1439 = vst [vmem:[#allocation11 + $0x24] sm:$0xf] %v1375
    %1440 = vst [vmem:[#allocation11 + $0x28] sm:$0xf] %v1376
    %1441 = vst [vmem:[#allocation11 + $0x2c] sm:$0xf] %v1377
    %1442 = vst [vmem:[#allocation11 + $0x30] sm:$0xf] %v1378
    %1443 = vst [vmem:[#allocation11 + $0x34] sm:$0xf] %v1379
    %1444 = vst [vmem:[#allocation11 + $0x38] sm:$0xf] %v1380
    %1445 = vst [vmem:[#allocation11 + $0x3c] sm:$0xf] %v1381
    %1446 = vst [vmem:[#allocation11 + $0x40] sm:$0xf] %v1382
    %1447 = vst [vmem:[#allocation11 + $0x44] sm:$0xf] %v1383
    %1448 = vst [vmem:[#allocation11 + $0x48] sm:$0xf] %v1384
    %1449 = vst [vmem:[#allocation11 + $0x4c] sm:$0xf] %v1385
    %1450 = vst [vmem:[#allocation11 + $0x50] sm:$0xf] %v1386
    %1451 = vst [vmem:[#allocation11 + $0x54] sm:$0xf] %v1387
    %1452 = vst [vmem:[#allocation11 + $0x58] sm:$0xf] %v1388
    %1453 = vst [vmem:[#allocation11 + $0x5c] sm:$0xf] %v1389
    %1454 = vst [vmem:[#allocation11 + $0x60] sm:$0xf] %v1390
    %1455 = vst [vmem:[#allocation11 + $0x64] sm:$0xf] %v1391
    %1456 = vst [vmem:[#allocation11 + $0x68] sm:$0xf] %v1392
    %1457 = vst [vmem:[#allocation11 + $0x6c] sm:$0xf] %v1393
    %1458 = vst [vmem:[#allocation11 + $0x70] sm:$0xf] %v1394
    %1459 = vst [vmem:[#allocation11 + $0x74] sm:$0xf] %v1395
    %1460 = vst [vmem:[#allocation11 + $0x78] sm:$0xf] %v1396
    %1461 = vst [vmem:[#allocation11 + $0x7c] sm:$0xf] %v1397
    // Predicated region
    $region58: #{tpu_custom_call.1} parent=1 // pred_check
      _
    $region59: #{tpu_custom_call.1} parent=1 // pred_check_branch
      %1463 = sbr.rel (0) target = $region61
    $region60: #{tpu_custom_call.1} parent=1 // pred_region
      %s1465 = ssub.s32 2048, 2048
      %1466 = vsyncadd [#allocation4], %s1465
      %s1467 = sshll.u32 [#allocation11], 4
      %s1468 = int_to_ptr.vmem [resolvable:$true] %s1467
      %1473 = dma.vmem_to_hbm [thread:$0]  %s1468, 2048, %s9, [#allocation4], 64, 64, 4
    $region61: #{tpu_custom_call.1} parent=1 // pred_fallthru
      _
    // Predicated region
    $region62: #{tpu_custom_call.1} parent=1 // pred_check
      _
    $region63: #{tpu_custom_call.1} parent=1 // pred_check_branch
      %1475 = sbr.rel (0) target = $region65
    $region64: #{tpu_custom_call.1} parent=1 // pred_region
      %1476 = dma.done [#allocation4], 2048
    $region65: #{tpu_custom_call.1} parent=1 // pred_fallthru
      _
    %1477 = vsyncpa [#allocation3], 1
    %1478 = vsyncpa [#allocation6], 1
    %1479 = vsyncpa [#allocation9], 1
    %1480 = vsyncpa [#allocation4], 1

</llo_original>
